<compile_context>
chip_gen: v7x
topology: tpu7x:2x2x1
jax: 0.10.0
libtpu: 0.0.40
codegen_flags: <defaults>
</compile_context>

<pallas_src>
import jax
import jax.numpy as jnp
from jax.experimental import pallas as pl
from jax.experimental.pallas import tpu as pltpu

# ---- small synthetic bert-base-style config ----
VOCAB = 100
MAX_POS = 16
TYPE_VOCAB = 2
HIDDEN = 32
HEADS = 4
HEAD_DIM = HIDDEN // HEADS
INTER = 64
LAYERS = 2
NUM_LABELS = 2
LN_EPS = 1e-12
FFN_CHUNK = min(INTER, 512)  # INTER tiling; 1 chunk at toy shapes, bounds VMEM at bert-base


def _vmem_limit_bytes():
    # Generation-dependent scoped-VMEM budget: ~96 MiB on v5e/v6e (128 MiB phys),
    # ~48 MiB on v7x (64 MiB phys). Falls back to a conservative 32 MiB.
    try:
        cap = getattr(pltpu.get_tpu_info(), "vmem_capacity_bytes", None)
        if cap is None:
            return 32 * 1024 * 1024
        return int(min(cap * 3 // 4, 96 * 1024 * 1024))
    except Exception:
        return 32 * 1024 * 1024


VMEM_LIMIT_BYTES = _vmem_limit_bytes()
_VMEM = pl.BlockSpec(memory_space=pltpu.MemorySpace.VMEM)


def _gelu(x):
    # TODO(synk): HF BERT uses exact erf-GELU; tanh approximation used for Mosaic-safe lowering.
    return 0.5 * x * (1.0 + jnp.tanh(0.7978845608028654 * (x + 0.044715 * x * x * x)))


def _ln(y, g, b):
    mu = jnp.mean(y, axis=-1, keepdims=True)
    yc = y - mu
    var = jnp.mean(yc * yc, axis=-1, keepdims=True)
    return yc * jax.lax.rsqrt(var + LN_EPS) * g + b


# ------------------------- Pallas kernels -------------------------

def _emb_ln_kernel(x_ref, g_ref, b_ref, o_ref):
    o_ref[0] = _ln(x_ref[0], g_ref[...], b_ref[...])


def embed_layernorm(x, g, b):
    B, S, H = x.shape
    return pl.pallas_call(
        _emb_ln_kernel,
        out_shape=jax.ShapeDtypeStruct((B, S, H), jnp.float32),
        grid=(B,),
        in_specs=[pl.BlockSpec((1, S, H), lambda i: (i, 0, 0)),
                  pl.BlockSpec((1, H), lambda i: (0, 0)),
                  pl.BlockSpec((1, H), lambda i: (0, 0))],
        out_specs=pl.BlockSpec((1, S, H), lambda i: (i, 0, 0)),
        compiler_params=pltpu.CompilerParams(
            dimension_semantics=("parallel",),
            vmem_limit_bytes=VMEM_LIMIT_BYTES),
    )(x, g.reshape(1, H), b.reshape(1, H))


def _encoder_layer_kernel(x_ref, mask_ref, wqkv_ref, bqkv_ref, wo_ref, bo_ref,
                          g1_ref, b1_ref, wi_ref, bi_ref, wd_ref, bd_ref,
                          g2_ref, b2_ref, o_ref, ctx_s):
    """One batch row: fused QKV + MHA + Wo + residual + LN1 + FFN + residual + LN2."""
    x = x_ref[0]                                               # [S, H] f32
    xb = x.astype(jnp.bfloat16)

    # ---- fused QKV projection: single lane-dense [S,H] @ [H,3H] MXU pass ----
    qkv = jnp.dot(xb, wqkv_ref[...],
                  preferred_element_type=jnp.float32) + bqkv_ref[...]    # [S, 3H] f32

    scale = 1.0 / (HEAD_DIM ** 0.5)
    neg = (1.0 - mask_ref[0]) * -10000.0                       # [1, S] HF additive mask

    # ---- multi-head attention; heads are static lane slices of lane-dense qkv ----
    for h in range(HEADS):                                     # unrolled at trace time
        lo = h * HEAD_DIM
        qh = qkv[:, lo:lo + HEAD_DIM].astype(jnp.bfloat16)
        kh = qkv[:, HIDDEN + lo:HIDDEN + lo + HEAD_DIM].astype(jnp.bfloat16)
        vh = qkv[:, 2 * HIDDEN + lo:2 * HIDDEN + lo + HEAD_DIM].astype(jnp.bfloat16)
        # q @ k^T without an explicit transpose op (contract last dims of both).
        s = jax.lax.dot_general(qh, kh, (((1,), (1,)), ((), ())),
                                preferred_element_type=jnp.float32) * scale + neg
        m = jnp.max(s, axis=-1, keepdims=True)
        p = jnp.exp(s - m)
        p = p * pl.reciprocal(jnp.sum(p, axis=-1, keepdims=True), approx=True)
        ctx_s[:, lo:lo + HEAD_DIM] = jnp.dot(p.astype(jnp.bfloat16), vh,
                                             preferred_element_type=jnp.float32)

    # ---- head merge + output projection: ONE deep-K contraction [S,H] @ [H,H] ----
    ctx = ctx_s[...]                                           # [S, H] f32 (merged heads)
    attn = jnp.dot(ctx.astype(jnp.bfloat16), wo_ref[...],
                   preferred_element_type=jnp.float32) + bo_ref[...]
    y1 = _ln(attn + x, g1_ref[...], b1_ref[...])               # residual + LN1 fused

    # ---- FFN, chunked over INTER to bound live f32 intermediate at real scale ----
    y1b = y1.astype(jnp.bfloat16)
    acc = jnp.zeros((y1.shape[0], HIDDEN), jnp.float32)
    for c0 in range(0, INTER, FFN_CHUNK):
        hc = jnp.dot(y1b, wi_ref[:, c0:c0 + FFN_CHUNK],
                     preferred_element_type=jnp.float32) + bi_ref[:, c0:c0 + FFN_CHUNK]
        hc = _gelu(hc)
        acc = acc + jnp.dot(hc.astype(jnp.bfloat16), wd_ref[c0:c0 + FFN_CHUNK, :],
                            preferred_element_type=jnp.float32)
    y2 = acc + bd_ref[...] + y1                                # residual fused
    o_ref[0] = _ln(y2, g2_ref[...], b2_ref[...])
    # TODO(synk): for S >> 128, replace the per-head [S,S] scores with a flash-style
    # online-softmax (KV "arbitrary" grid axis + m/l/acc scratch).


def encoder_layer(x, mask3, lp):
    B, S, _ = x.shape
    return pl.pallas_call(
        _encoder_layer_kernel,
        out_shape=jax.ShapeDtypeStruct((B, S, HIDDEN), jnp.float32),
        grid=(B,),
        in_specs=[
            pl.BlockSpec((1, S, HIDDEN), lambda b: (b, 0, 0)),        # x
            pl.BlockSpec((1, 1, S), lambda b: (b, 0, 0)),             # mask
            pl.BlockSpec((HIDDEN, 3 * HIDDEN), lambda b: (0, 0)),     # w_qkv
            pl.BlockSpec((1, 3 * HIDDEN), lambda b: (0, 0)),          # b_qkv
            pl.BlockSpec((HIDDEN, HIDDEN), lambda b: (0, 0)),         # wo
            pl.BlockSpec((1, HIDDEN), lambda b: (0, 0)),              # bo
            pl.BlockSpec((1, HIDDEN), lambda b: (0, 0)),              # ln1_g
            pl.BlockSpec((1, HIDDEN), lambda b: (0, 0)),              # ln1_b
            pl.BlockSpec((HIDDEN, INTER), lambda b: (0, 0)),          # wi
            pl.BlockSpec((1, INTER), lambda b: (0, 0)),               # bi
            pl.BlockSpec((INTER, HIDDEN), lambda b: (0, 0)),          # wd
            pl.BlockSpec((1, HIDDEN), lambda b: (0, 0)),              # bd
            pl.BlockSpec((1, HIDDEN), lambda b: (0, 0)),              # ln2_g
            pl.BlockSpec((1, HIDDEN), lambda b: (0, 0)),              # ln2_b
        ],
        out_specs=pl.BlockSpec((1, S, HIDDEN), lambda b: (b, 0, 0)),
        scratch_shapes=[pltpu.VMEM((S, HIDDEN), jnp.float32)],        # merged-head ctx
        compiler_params=pltpu.CompilerParams(
            dimension_semantics=("parallel",),                        # B>=2 -> both v7x TCs
            vmem_limit_bytes=VMEM_LIMIT_BYTES),
    )(x, mask3,
      lp["w_qkv"], lp["b_qkv"].reshape(1, 3 * HIDDEN),
      lp["wo"], lp["bo"].reshape(1, HIDDEN),
      lp["ln1_g"].reshape(1, HIDDEN), lp["ln1_b"].reshape(1, HIDDEN),
      lp["wi"], lp["bi"].reshape(1, INTER),
      lp["wd"], lp["bd"].reshape(1, HIDDEN),
      lp["ln2_g"].reshape(1, HIDDEN), lp["ln2_b"].reshape(1, HIDDEN))


def _head_kernel(cls_ref, pw_ref, pb_ref, cw_ref, cb_ref, onehot_ref,
                 logits_ref, loss_ref):
    """Fused pooler (dense+tanh) + classifier + mean cross-entropy."""
    pooled = jnp.tanh(jnp.dot(cls_ref[...].astype(jnp.bfloat16), pw_ref[...],
                              preferred_element_type=jnp.float32) + pb_ref[...])
    logits = jnp.dot(pooled.astype(jnp.bfloat16), cw_ref[...],
                     preferred_element_type=jnp.float32) + cb_ref[...]
    logits_ref[...] = logits
    m = jnp.max(logits, axis=-1, keepdims=True)
    lse = m + jnp.log(jnp.sum(jnp.exp(logits - m), axis=-1, keepdims=True))
    nll = jnp.sum(onehot_ref[...] * (lse - logits), axis=-1, keepdims=True)   # (B,1)
    loss_ref[...] = jnp.sum(nll, axis=0, keepdims=True) * (1.0 / nll.shape[0])


def classifier_head(cls, pw, pb, cw, cb, onehot):
    B = cls.shape[0]
    logits, loss = pl.pallas_call(
        _head_kernel,
        out_shape=(jax.ShapeDtypeStruct((B, NUM_LABELS), jnp.float32),
                   jax.ShapeDtypeStruct((1, 1), jnp.float32)),
        in_specs=[_VMEM] * 6,
        out_specs=(_VMEM, _VMEM),
        compiler_params=pltpu.CompilerParams(vmem_limit_bytes=VMEM_LIMIT_BYTES),
    )(cls, pw, pb.reshape(1, HIDDEN), cw, cb.reshape(1, NUM_LABELS), onehot)
    return logits, loss


# ------------------------- parameters -------------------------

def init_params(key):
    def nrm(k, shape, dtype=jnp.float32):
        return (jax.random.normal(k, shape, jnp.float32) * 0.02).astype(dtype)

    keys = iter(jax.random.split(key, 8 + LAYERS * 8))
    p = {
        "word_emb": nrm(next(keys), (VOCAB, HIDDEN)),
        "pos_emb": nrm(next(keys), (MAX_POS, HIDDEN)),
        "type_emb": nrm(next(keys), (TYPE_VOCAB, HIDDEN)),
        "emb_ln_g": jnp.ones((HIDDEN,), jnp.float32),
        "emb_ln_b": jnp.zeros((HIDDEN,), jnp.float32),
        "pool_w": nrm(next(keys), (HIDDEN, HIDDEN), jnp.bfloat16),
        "pool_b": jnp.zeros((HIDDEN,), jnp.float32),
        "cls_w": nrm(next(keys), (HIDDEN, NUM_LABELS), jnp.bfloat16),
        "cls_b": jnp.zeros((NUM_LABELS,), jnp.float32),
    }
    layers = []
    for _ in range(LAYERS):
        lp = {
            # Wq|Wk|Wv fused into one [H, 3H] bf16 weight (single QKV matmul).
            "w_qkv": nrm(next(keys), (HIDDEN, 3 * HIDDEN), jnp.bfloat16),
            "b_qkv": jnp.zeros((3 * HIDDEN,), jnp.float32),
            "wo": nrm(next(keys), (HIDDEN, HIDDEN), jnp.bfloat16),
            "bo": jnp.zeros((HIDDEN,), jnp.float32),
            "ln1_g": jnp.ones((HIDDEN,), jnp.float32),
            "ln1_b": jnp.zeros((HIDDEN,), jnp.float32),
            "wi": nrm(next(keys), (HIDDEN, INTER), jnp.bfloat16),
            "bi": jnp.zeros((INTER,), jnp.float32),
            "wd": nrm(next(keys), (INTER, HIDDEN), jnp.bfloat16),
            "bd": jnp.zeros((HIDDEN,), jnp.float32),
            "ln2_g": jnp.ones((HIDDEN,), jnp.float32),
            "ln2_b": jnp.zeros((HIDDEN,), jnp.float32),
        }
        layers.append(lp)
    p["layers"] = layers
    return p


# ------------------------- forward pass -------------------------

def bert_forward(params, input_ids, attention_mask, token_type_ids, labels):
    B, S = input_ids.shape

    # --- embeddings (gather is XLA glue; LayerNorm is a Pallas kernel) ---
    we = jnp.take(params["word_emb"], input_ids, axis=0)                  # [B,S,H]
    pe = params["pos_emb"][None, :S, :]                                   # [1,S,H]
    te = jnp.take(params["type_emb"], token_type_ids, axis=0)             # [B,S,H]
    x = embed_layernorm(we + pe + te, params["emb_ln_g"], params["emb_ln_b"])

    # small [B,1,S] f32 mask; (1-mask)*-1e4 broadcast happens inside the kernel
    mask3 = attention_mask.astype(jnp.float32).reshape(B, 1, S)

    # --- transformer encoder: ONE fused pallas_call per layer ---
    for lp in params["layers"]:
        x = encoder_layer(x, mask3, lp)

    # --- fused pooler + classifier + cross-entropy (dropout identity: eval mode) ---
    cls = x[:, 0, :]                                                      # [B,H]
    onehot = jax.nn.one_hot(labels, NUM_LABELS, dtype=jnp.float32)
    logits, loss = classifier_head(cls, params["pool_w"], params["pool_b"],
                                   params["cls_w"], params["cls_b"], onehot)
    return loss[0, 0], logits


# ------------------------- main -------------------------

if __name__ == "__main__":
    key = jax.random.PRNGKey(0)
    pkey, ikey, lkey = jax.random.split(key, 3)

    B, S = 2, 8
    params = init_params(pkey)
    text = jax.random.randint(ikey, (B, S), 0, VOCAB, dtype=jnp.int32)        # input ids
    label = jax.random.randint(lkey, (B,), 0, NUM_LABELS, dtype=jnp.int32)
    attention_mask = jnp.ones((B, S), jnp.int32)
    token_type_ids = jnp.zeros((B, S), jnp.int32)

    fwd = jax.jit(bert_forward)
    loss, logits = fwd(params, text, attention_mask, token_type_ids, label)
    jax.block_until_ready(loss)
    jax.block_until_ready(logits)
    assert loss.shape == () and logits.shape == (B, NUM_LABELS)
    print("KERNEL_OK")
</pallas_src>

<mosaic_0001>
module attributes {stable_mosaic.version = 11 : i64} {
  func.func @_head_kernel(%arg0: memref<2x32xf32, #tpu.memory_space<vmem>>, %arg1: memref<32x32xbf16, #tpu.memory_space<vmem>>, %arg2: memref<1x32xf32, #tpu.memory_space<vmem>>, %arg3: memref<32x2xbf16, #tpu.memory_space<vmem>>, %arg4: memref<1x2xf32, #tpu.memory_space<vmem>>, %arg5: memref<2x2xf32, #tpu.memory_space<vmem>>, %arg6: memref<2x2xf32, #tpu.memory_space<vmem>>, %arg7: memref<1x1xf32, #tpu.memory_space<vmem>>) attributes {dimension_semantics = [], scalar_prefetch = 0 : i64, scratch_operands = 0 : i64, tpu.core_type = #tpu.core_type<tc>} {
    %c0 = arith.constant 0 : index
    %c0_0 = arith.constant 0 : index
    %0 = vector.load %arg0[%c0, %c0_0] : memref<2x32xf32, #tpu.memory_space<vmem>>, vector<2x32xf32>
    %1 = arith.truncf %0 : vector<2x32xf32> to vector<2x32xbf16>
    %c0_1 = arith.constant 0 : index
    %c0_2 = arith.constant 0 : index
    %2 = vector.load %arg1[%c0_1, %c0_2] : memref<32x32xbf16, #tpu.memory_space<vmem>>, vector<32x32xbf16>
    %cst = arith.constant dense<0.000000e+00> : vector<2x32xf32>
    %3 = tpu.matmul %1, %2, %cst {dimension_numbers = #tpu.dot_dimension_numbers<[1], [0], [0], [1], [0, 0, 1, 1], [], []>} : vector<2x32xbf16>, vector<32x32xbf16>, vector<2x32xf32> -> vector<2x32xf32>
    %c0_3 = arith.constant 0 : index
    %c0_4 = arith.constant 0 : index
    %4 = vector.load %arg2[%c0_3, %c0_4] : memref<1x32xf32, #tpu.memory_space<vmem>>, vector<1x32xf32>
    %5 = vector.broadcast %4 : vector<1x32xf32> to vector<2x32xf32>
    %6 = arith.addf %3, %5 : vector<2x32xf32>
    %7 = math.tanh %6 : vector<2x32xf32>
    %8 = arith.truncf %7 : vector<2x32xf32> to vector<2x32xbf16>
    %c0_5 = arith.constant 0 : index
    %c0_6 = arith.constant 0 : index
    %9 = vector.load %arg3[%c0_5, %c0_6] : memref<32x2xbf16, #tpu.memory_space<vmem>>, vector<32x2xbf16>
    %cst_7 = arith.constant dense<0.000000e+00> : vector<2x2xf32>
    %10 = tpu.matmul %8, %9, %cst_7 {dimension_numbers = #tpu.dot_dimension_numbers<[1], [0], [0], [1], [0, 0, 1, 1], [], []>} : vector<2x32xbf16>, vector<32x2xbf16>, vector<2x2xf32> -> vector<2x2xf32>
    %c0_8 = arith.constant 0 : index
    %c0_9 = arith.constant 0 : index
    %11 = vector.load %arg4[%c0_8, %c0_9] : memref<1x2xf32, #tpu.memory_space<vmem>>, vector<1x2xf32>
    %12 = vector.broadcast %11 : vector<1x2xf32> to vector<2x2xf32>
    %13 = arith.addf %10, %12 : vector<2x2xf32>
    %c0_10 = arith.constant 0 : index
    %c0_11 = arith.constant 0 : index
    %14 = vector.load %arg6[%c0_10, %c0_11] : memref<2x2xf32, #tpu.memory_space<vmem>>, vector<2x2xf32>
    tpu.vector_store %arg6[%c0_10, %c0_11], %13 {strides = array<i32>} : memref<2x2xf32, #tpu.memory_space<vmem>>, vector<2x2xf32>,
    %cst_12 = arith.constant dense<0xFF800000> : vector<2xf32>
    %15 = vector.multi_reduction <maximumf>, %13, %cst_12 [1] : vector<2x2xf32> to vector<2xf32>
    %16 = vector.shape_cast %15 : vector<2xf32> to vector<2x1xf32>
    %17 = vector.broadcast %16 : vector<2x1xf32> to vector<2x2xf32>
    %18 = arith.subf %13, %17 : vector<2x2xf32>
    %19 = math.exp %18 : vector<2x2xf32>
    %cst_13 = arith.constant dense<0.000000e+00> : vector<2xf32>
    %20 = vector.multi_reduction <add>, %19, %cst_13 [1] : vector<2x2xf32> to vector<2xf32>
    %21 = vector.shape_cast %20 : vector<2xf32> to vector<2x1xf32>
    %22 = math.log %21 : vector<2x1xf32>
    %23 = arith.addf %16, %22 : vector<2x1xf32>
    %c0_14 = arith.constant 0 : index
    %c0_15 = arith.constant 0 : index
    %24 = vector.load %arg5[%c0_14, %c0_15] : memref<2x2xf32, #tpu.memory_space<vmem>>, vector<2x2xf32>
    %25 = vector.broadcast %23 : vector<2x1xf32> to vector<2x2xf32>
    %26 = arith.subf %25, %13 : vector<2x2xf32>
    %27 = arith.mulf %24, %26 : vector<2x2xf32>
    %cst_16 = arith.constant dense<0.000000e+00> : vector<2xf32>
    %28 = vector.multi_reduction <add>, %27, %cst_16 [1] : vector<2x2xf32> to vector<2xf32>
    %29 = vector.shape_cast %28 : vector<2xf32> to vector<2x1xf32>
    %cst_17 = arith.constant dense<0.000000e+00> : vector<1xf32>
    %30 = vector.multi_reduction <add>, %29, %cst_17 [0] : vector<2x1xf32> to vector<1xf32>
    %31 = vector.shape_cast %30 : vector<1xf32> to vector<1x1xf32>
    %cst_18 = arith.constant 5.000000e-01 : f32
    %32 = vector.broadcast %cst_18 : f32 to vector<1x1xf32>
    %33 = arith.mulf %31, %32 : vector<1x1xf32>
    %c0_19 = arith.constant 0 : index
    %c0_20 = arith.constant 0 : index
    %34 = vector.load %arg7[%c0_19, %c0_20] : memref<1x1xf32, #tpu.memory_space<vmem>>, vector<1x1xf32>
    tpu.vector_store %arg7[%c0_19, %c0_20], %33 {strides = array<i32>} : memref<1x1xf32, #tpu.memory_space<vmem>>, vector<1x1xf32>,
    return
  }
}

module attributes {stable_mosaic.version = 11 : i64} {
  func.func @_emb_ln_kernel(%arg0: i32, %arg1: memref<1x8x32xf32, #tpu.memory_space<vmem>>, %arg2: memref<1x32xf32, #tpu.memory_space<vmem>>, %arg3: memref<1x32xf32, #tpu.memory_space<vmem>>, %arg4: memref<1x8x32xf32, #tpu.memory_space<vmem>>) attributes {dimension_semantics = [#tpu.dimension_semantics<parallel>], iteration_bounds = array<i64: 2>, scalar_prefetch = 0 : i64, scratch_operands = 0 : i64, tpu.core_type = #tpu.core_type<tc>, window_params = [{transform_indices = @transform_0, window_bounds = array<i64: 1, 8, 32>}, {pipeline_mode = #tpu.pipeline_mode<synchronous>, transform_indices = @transform_1, window_bounds = array<i64: 1, 32>}, {pipeline_mode = #tpu.pipeline_mode<synchronous>, transform_indices = @transform_2, window_bounds = array<i64: 1, 32>}, {transform_indices = @transform_3, window_bounds = array<i64: 1, 8, 32>}]} {
    %c0 = arith.constant 0 : index
    %c0_0 = arith.constant 0 : index
    %c0_1 = arith.constant 0 : index
    %0 = vector.load %arg1[%c0, %c0_0, %c0_1] : memref<1x8x32xf32, #tpu.memory_space<vmem>>, vector<1x8x32xf32>
    %1 = vector.shape_cast %0 : vector<1x8x32xf32> to vector<8x32xf32>
    %c0_2 = arith.constant 0 : index
    %c0_3 = arith.constant 0 : index
    %2 = vector.load %arg2[%c0_2, %c0_3] : memref<1x32xf32, #tpu.memory_space<vmem>>, vector<1x32xf32>
    %c0_4 = arith.constant 0 : index
    %c0_5 = arith.constant 0 : index
    %3 = vector.load %arg3[%c0_4, %c0_5] : memref<1x32xf32, #tpu.memory_space<vmem>>, vector<1x32xf32>
    %cst = arith.constant dense<0.000000e+00> : vector<8xf32>
    %4 = vector.multi_reduction <add>, %1, %cst [1] : vector<8x32xf32> to vector<8xf32>
    %5 = vector.shape_cast %4 : vector<8xf32> to vector<8x1xf32>
    %cst_6 = arith.constant 3.200000e+01 : f32
    %6 = vector.broadcast %cst_6 : f32 to vector<8x1xf32>
    %7 = arith.divf %5, %6 : vector<8x1xf32>
    %8 = vector.broadcast %7 : vector<8x1xf32> to vector<8x32xf32>
    %9 = arith.subf %1, %8 : vector<8x32xf32>
    %10 = arith.mulf %9, %9 : vector<8x32xf32>
    %cst_7 = arith.constant dense<0.000000e+00> : vector<8xf32>
    %11 = vector.multi_reduction <add>, %10, %cst_7 [1] : vector<8x32xf32> to vector<8xf32>
    %12 = vector.shape_cast %11 : vector<8xf32> to vector<8x1xf32>
    %cst_8 = arith.constant 3.200000e+01 : f32
    %13 = vector.broadcast %cst_8 : f32 to vector<8x1xf32>
    %14 = arith.divf %12, %13 : vector<8x1xf32>
    %cst_9 = arith.constant 9.99999996E-13 : f32
    %15 = vector.broadcast %cst_9 : f32 to vector<8x1xf32>
    %16 = arith.addf %14, %15 : vector<8x1xf32>
    %17 = math.rsqrt %16 : vector<8x1xf32>
    %18 = vector.broadcast %17 : vector<8x1xf32> to vector<8x32xf32>
    %19 = arith.mulf %9, %18 : vector<8x32xf32>
    %20 = vector.broadcast %2 : vector<1x32xf32> to vector<8x32xf32>
    %21 = arith.mulf %19, %20 : vector<8x32xf32>
    %22 = vector.broadcast %3 : vector<1x32xf32> to vector<8x32xf32>
    %23 = arith.addf %21, %22 : vector<8x32xf32>
    %c0_10 = arith.constant 0 : index
    %c0_11 = arith.constant 0 : index
    %c0_12 = arith.constant 0 : index
    %24 = vector.load %arg4[%c0_10, %c0_11, %c0_12] : memref<1x8x32xf32, #tpu.memory_space<vmem>>, vector<1x8x32xf32>
    %25 = vector.shape_cast %24 : vector<1x8x32xf32> to vector<8x32xf32>
    %26 = vector.shape_cast %23 : vector<8x32xf32> to vector<1x8x32xf32>
    tpu.vector_store %arg4[%c0_10, %c0_11, %c0_12], %26 {strides = array<i32>} : memref<1x8x32xf32, #tpu.memory_space<vmem>>, vector<1x8x32xf32>,
    return
  }
  func.func @transform_0(%arg0: i32) -> (i32, i32, i32) {
    %c0_i32 = arith.constant 0 : i32
    %c0_i32_0 = arith.constant 0 : i32
    %c0_i32_1 = arith.constant 0 : i32
    return %arg0, %c0_i32, %c0_i32_0 : i32, i32, i32
  }
  func.func @transform_1(%arg0: i32) -> (i32, i32) {
    %c0_i32 = arith.constant 0 : i32
    %c0_i32_0 = arith.constant 0 : i32
    %c0_i32_1 = arith.constant 0 : i32
    return %c0_i32, %c0_i32_0 : i32, i32
  }
  func.func @transform_2(%arg0: i32) -> (i32, i32) {
    %c0_i32 = arith.constant 0 : i32
    %c0_i32_0 = arith.constant 0 : i32
    %c0_i32_1 = arith.constant 0 : i32
    return %c0_i32, %c0_i32_0 : i32, i32
  }
  func.func @transform_3(%arg0: i32) -> (i32, i32, i32) {
    %c0_i32 = arith.constant 0 : i32
    %c0_i32_0 = arith.constant 0 : i32
    %c0_i32_1 = arith.constant 0 : i32
    return %arg0, %c0_i32, %c0_i32_0 : i32, i32, i32
  }
}

module attributes {stable_mosaic.version = 11 : i64} {
  func.func @_encoder_layer_kernel(%arg0: i32, %arg1: memref<1x8x32xf32, #tpu.memory_space<vmem>>, %arg2: memref<1x1x8xf32, #tpu.memory_space<vmem>>, %arg3: memref<32x96xbf16, #tpu.memory_space<vmem>>, %arg4: memref<1x96xf32, #tpu.memory_space<vmem>>, %arg5: memref<32x32xbf16, #tpu.memory_space<vmem>>, %arg6: memref<1x32xf32, #tpu.memory_space<vmem>>, %arg7: memref<1x32xf32, #tpu.memory_space<vmem>>, %arg8: memref<1x32xf32, #tpu.memory_space<vmem>>, %arg9: memref<32x64xbf16, #tpu.memory_space<vmem>>, %arg10: memref<1x64xf32, #tpu.memory_space<vmem>>, %arg11: memref<64x32xbf16, #tpu.memory_space<vmem>>, %arg12: memref<1x32xf32, #tpu.memory_space<vmem>>, %arg13: memref<1x32xf32, #tpu.memory_space<vmem>>, %arg14: memref<1x32xf32, #tpu.memory_space<vmem>>, %arg15: memref<1x8x32xf32, #tpu.memory_space<vmem>>, %arg16: memref<8x32xf32, #tpu.memory_space<vmem>>) attributes {dimension_semantics = [#tpu.dimension_semantics<parallel>], iteration_bounds = array<i64: 2>, scalar_prefetch = 0 : i64, scratch_operands = 1 : i64, tpu.core_type = #tpu.core_type<tc>, window_params = [{transform_indices = @transform_0, window_bounds = array<i64: 1, 8, 32>}, {transform_indices = @transform_1, window_bounds = array<i64: 1, 1, 8>}, {pipeline_mode = #tpu.pipeline_mode<synchronous>, transform_indices = @transform_2, window_bounds = array<i64: 32, 96>}, {pipeline_mode = #tpu.pipeline_mode<synchronous>, transform_indices = @transform_3, window_bounds = array<i64: 1, 96>}, {pipeline_mode = #tpu.pipeline_mode<synchronous>, transform_indices = @transform_4, window_bounds = array<i64: 32, 32>}, {pipeline_mode = #tpu.pipeline_mode<synchronous>, transform_indices = @transform_5, window_bounds = array<i64: 1, 32>}, {pipeline_mode = #tpu.pipeline_mode<synchronous>, transform_indices = @transform_6, window_bounds = array<i64: 1, 32>}, {pipeline_mode = #tpu.pipeline_mode<synchronous>, transform_indices = @transform_7, window_bounds = array<i64: 1, 32>}, {pipeline_mode = #tpu.pipeline_mode<synchronous>, transform_indices = @transform_8, window_bounds = array<i64: 32, 64>}, {pipeline_mode = #tpu.pipeline_mode<synchronous>, transform_indices = @transform_9, window_bounds = array<i64: 1, 64>}, {pipeline_mode = #tpu.pipeline_mode<synchronous>, transform_indices = @transform_10, window_bounds = array<i64: 64, 32>}, {pipeline_mode = #tpu.pipeline_mode<synchronous>, transform_indices = @transform_11, window_bounds = array<i64: 1, 32>}, {pipeline_mode = #tpu.pipeline_mode<synchronous>, transform_indices = @transform_12, window_bounds = array<i64: 1, 32>}, {pipeline_mode = #tpu.pipeline_mode<synchronous>, transform_indices = @transform_13, window_bounds = array<i64: 1, 32>}, {transform_indices = @transform_14, window_bounds = array<i64: 1, 8, 32>}]} {
    %c0 = arith.constant 0 : index
    %c0_0 = arith.constant 0 : index
    %c0_1 = arith.constant 0 : index
    %0 = vector.load %arg1[%c0, %c0_0, %c0_1] : memref<1x8x32xf32, #tpu.memory_space<vmem>>, vector<1x8x32xf32>
    %1 = vector.shape_cast %0 : vector<1x8x32xf32> to vector<8x32xf32>
    %2 = arith.truncf %1 : vector<8x32xf32> to vector<8x32xbf16>
    %c0_2 = arith.constant 0 : index
    %c0_3 = arith.constant 0 : index
    %3 = vector.load %arg3[%c0_2, %c0_3] : memref<32x96xbf16, #tpu.memory_space<vmem>>, vector<32x96xbf16>
    %cst = arith.constant dense<0.000000e+00> : vector<8x96xf32>
    %4 = tpu.matmul %2, %3, %cst {dimension_numbers = #tpu.dot_dimension_numbers<[1], [0], [0], [1], [0, 0, 1, 1], [], []>} : vector<8x32xbf16>, vector<32x96xbf16>, vector<8x96xf32> -> vector<8x96xf32>
    %c0_4 = arith.constant 0 : index
    %c0_5 = arith.constant 0 : index
    %5 = vector.load %arg4[%c0_4, %c0_5] : memref<1x96xf32, #tpu.memory_space<vmem>>, vector<1x96xf32>
    %6 = vector.broadcast %5 : vector<1x96xf32> to vector<8x96xf32>
    %7 = arith.addf %4, %6 : vector<8x96xf32>
    %c0_6 = arith.constant 0 : index
    %c0_7 = arith.constant 0 : index
    %c0_8 = arith.constant 0 : index
    %8 = vector.load %arg2[%c0_6, %c0_7, %c0_8] : memref<1x1x8xf32, #tpu.memory_space<vmem>>, vector<1x1x8xf32>
    %9 = vector.shape_cast %8 : vector<1x1x8xf32> to vector<1x8xf32>
    %cst_9 = arith.constant 1.000000e+00 : f32
    %10 = vector.broadcast %cst_9 : f32 to vector<1x8xf32>
    %11 = arith.subf %10, %9 : vector<1x8xf32>
    %cst_10 = arith.constant -1.000000e+04 : f32
    %12 = vector.broadcast %cst_10 : f32 to vector<1x8xf32>
    %13 = arith.mulf %11, %12 : vector<1x8xf32>
    %14 = vector.extract_strided_slice %7 {offsets = [0, 0], sizes = [8, 8], strides = [1, 1]} : vector<8x96xf32> to vector<8x8xf32>
    %15 = arith.truncf %14 : vector<8x8xf32> to vector<8x8xbf16>
    %16 = vector.extract_strided_slice %7 {offsets = [0, 32], sizes = [8, 8], strides = [1, 1]} : vector<8x96xf32> to vector<8x8xf32>
    %17 = arith.truncf %16 : vector<8x8xf32> to vector<8x8xbf16>
    %18 = vector.extract_strided_slice %7 {offsets = [0, 64], sizes = [8, 8], strides = [1, 1]} : vector<8x96xf32> to vector<8x8xf32>
    %19 = arith.truncf %18 : vector<8x8xf32> to vector<8x8xbf16>
    %cst_11 = arith.constant dense<0.000000e+00> : vector<8x8xf32>
    %20 = tpu.matmul %15, %17, %cst_11 {dimension_numbers = #tpu.dot_dimension_numbers<[1], [1], [0], [0], [0, 0, 1, 0], [], []>} : vector<8x8xbf16>, vector<8x8xbf16>, vector<8x8xf32> -> vector<8x8xf32>
    %cst_12 = arith.constant 0.353553385 : f32
    %21 = vector.broadcast %cst_12 : f32 to vector<8x8xf32>
    %22 = arith.mulf %20, %21 : vector<8x8xf32>
    %23 = vector.broadcast %13 : vector<1x8xf32> to vector<8x8xf32>
    %24 = arith.addf %22, %23 : vector<8x8xf32>
    %cst_13 = arith.constant dense<0xFF800000> : vector<8xf32>
    %25 = vector.multi_reduction <maximumf>, %24, %cst_13 [1] : vector<8x8xf32> to vector<8xf32>
    %26 = vector.shape_cast %25 : vector<8xf32> to vector<8x1xf32>
    %27 = vector.broadcast %26 : vector<8x1xf32> to vector<8x8xf32>
    %28 = arith.subf %24, %27 : vector<8x8xf32>
    %29 = math.exp %28 : vector<8x8xf32>
    %cst_14 = arith.constant dense<0.000000e+00> : vector<8xf32>
    %30 = vector.multi_reduction <add>, %29, %cst_14 [1] : vector<8x8xf32> to vector<8xf32>
    %31 = vector.shape_cast %30 : vector<8xf32> to vector<8x1xf32>
    %32 = tpu.reciprocal %31 {approx = true} : vector<8x1xf32> -> vector<8x1xf32>
    %33 = vector.broadcast %32 : vector<8x1xf32> to vector<8x8xf32>
    %34 = arith.mulf %29, %33 : vector<8x8xf32>
    %35 = arith.truncf %34 : vector<8x8xf32> to vector<8x8xbf16>
    %cst_15 = arith.constant dense<0.000000e+00> : vector<8x8xf32>
    %36 = tpu.matmul %35, %19, %cst_15 {dimension_numbers = #tpu.dot_dimension_numbers<[1], [0], [0], [1], [0, 0, 1, 1], [], []>} : vector<8x8xbf16>, vector<8x8xbf16>, vector<8x8xf32> -> vector<8x8xf32>
    %c0_16 = arith.constant 0 : index
    %c0_17 = arith.constant 0 : index
    %37 = vector.load %arg16[%c0_16, %c0_17] : memref<8x32xf32, #tpu.memory_space<vmem>>, vector<8x8xf32>
    tpu.vector_store %arg16[%c0_16, %c0_17], %36 {strides = array<i32>} : memref<8x32xf32, #tpu.memory_space<vmem>>, vector<8x8xf32>,
    %38 = vector.extract_strided_slice %7 {offsets = [0, 8], sizes = [8, 8], strides = [1, 1]} : vector<8x96xf32> to vector<8x8xf32>
    %39 = arith.truncf %38 : vector<8x8xf32> to vector<8x8xbf16>
    %40 = vector.extract_strided_slice %7 {offsets = [0, 40], sizes = [8, 8], strides = [1, 1]} : vector<8x96xf32> to vector<8x8xf32>
    %41 = arith.truncf %40 : vector<8x8xf32> to vector<8x8xbf16>
    %42 = vector.extract_strided_slice %7 {offsets = [0, 72], sizes = [8, 8], strides = [1, 1]} : vector<8x96xf32> to vector<8x8xf32>
    %43 = arith.truncf %42 : vector<8x8xf32> to vector<8x8xbf16>
    %cst_18 = arith.constant dense<0.000000e+00> : vector<8x8xf32>
    %44 = tpu.matmul %39, %41, %cst_18 {dimension_numbers = #tpu.dot_dimension_numbers<[1], [1], [0], [0], [0, 0, 1, 0], [], []>} : vector<8x8xbf16>, vector<8x8xbf16>, vector<8x8xf32> -> vector<8x8xf32>
    %cst_19 = arith.constant 0.353553385 : f32
    %45 = vector.broadcast %cst_19 : f32 to vector<8x8xf32>
    %46 = arith.mulf %44, %45 : vector<8x8xf32>
    %47 = vector.broadcast %13 : vector<1x8xf32> to vector<8x8xf32>
    %48 = arith.addf %46, %47 : vector<8x8xf32>
    %cst_20 = arith.constant dense<0xFF800000> : vector<8xf32>
    %49 = vector.multi_reduction <maximumf>, %48, %cst_20 [1] : vector<8x8xf32> to vector<8xf32>
    %50 = vector.shape_cast %49 : vector<8xf32> to vector<8x1xf32>
    %51 = vector.broadcast %50 : vector<8x1xf32> to vector<8x8xf32>
    %52 = arith.subf %48, %51 : vector<8x8xf32>
    %53 = math.exp %52 : vector<8x8xf32>
    %cst_21 = arith.constant dense<0.000000e+00> : vector<8xf32>
    %54 = vector.multi_reduction <add>, %53, %cst_21 [1] : vector<8x8xf32> to vector<8xf32>
    %55 = vector.shape_cast %54 : vector<8xf32> to vector<8x1xf32>
    %56 = tpu.reciprocal %55 {approx = true} : vector<8x1xf32> -> vector<8x1xf32>
    %57 = vector.broadcast %56 : vector<8x1xf32> to vector<8x8xf32>
    %58 = arith.mulf %53, %57 : vector<8x8xf32>
    %59 = arith.truncf %58 : vector<8x8xf32> to vector<8x8xbf16>
    %cst_22 = arith.constant dense<0.000000e+00> : vector<8x8xf32>
    %60 = tpu.matmul %59, %43, %cst_22 {dimension_numbers = #tpu.dot_dimension_numbers<[1], [0], [0], [1], [0, 0, 1, 1], [], []>} : vector<8x8xbf16>, vector<8x8xbf16>, vector<8x8xf32> -> vector<8x8xf32>
    %c0_23 = arith.constant 0 : index
    %c8 = arith.constant 8 : index
    %61 = vector.load %arg16[%c0_23, %c8] : memref<8x32xf32, #tpu.memory_space<vmem>>, vector<8x8xf32>
    tpu.vector_store %arg16[%c0_23, %c8], %60 {strides = array<i32>} : memref<8x32xf32, #tpu.memory_space<vmem>>, vector<8x8xf32>,
    %62 = vector.extract_strided_slice %7 {offsets = [0, 16], sizes = [8, 8], strides = [1, 1]} : vector<8x96xf32> to vector<8x8xf32>
    %63 = arith.truncf %62 : vector<8x8xf32> to vector<8x8xbf16>
    %64 = vector.extract_strided_slice %7 {offsets = [0, 48], sizes = [8, 8], strides = [1, 1]} : vector<8x96xf32> to vector<8x8xf32>
    %65 = arith.truncf %64 : vector<8x8xf32> to vector<8x8xbf16>
    %66 = vector.extract_strided_slice %7 {offsets = [0, 80], sizes = [8, 8], strides = [1, 1]} : vector<8x96xf32> to vector<8x8xf32>
    %67 = arith.truncf %66 : vector<8x8xf32> to vector<8x8xbf16>
    %cst_24 = arith.constant dense<0.000000e+00> : vector<8x8xf32>
    %68 = tpu.matmul %63, %65, %cst_24 {dimension_numbers = #tpu.dot_dimension_numbers<[1], [1], [0], [0], [0, 0, 1, 0], [], []>} : vector<8x8xbf16>, vector<8x8xbf16>, vector<8x8xf32> -> vector<8x8xf32>
    %cst_25 = arith.constant 0.353553385 : f32
    %69 = vector.broadcast %cst_25 : f32 to vector<8x8xf32>
    %70 = arith.mulf %68, %69 : vector<8x8xf32>
    %71 = vector.broadcast %13 : vector<1x8xf32> to vector<8x8xf32>
    %72 = arith.addf %70, %71 : vector<8x8xf32>
    %cst_26 = arith.constant dense<0xFF800000> : vector<8xf32>
    %73 = vector.multi_reduction <maximumf>, %72, %cst_26 [1] : vector<8x8xf32> to vector<8xf32>
    %74 = vector.shape_cast %73 : vector<8xf32> to vector<8x1xf32>
    %75 = vector.broadcast %74 : vector<8x1xf32> to vector<8x8xf32>
    %76 = arith.subf %72, %75 : vector<8x8xf32>
    %77 = math.exp %76 : vector<8x8xf32>
    %cst_27 = arith.constant dense<0.000000e+00> : vector<8xf32>
    %78 = vector.multi_reduction <add>, %77, %cst_27 [1] : vector<8x8xf32> to vector<8xf32>
    %79 = vector.shape_cast %78 : vector<8xf32> to vector<8x1xf32>
    %80 = tpu.reciprocal %79 {approx = true} : vector<8x1xf32> -> vector<8x1xf32>
    %81 = vector.broadcast %80 : vector<8x1xf32> to vector<8x8xf32>
    %82 = arith.mulf %77, %81 : vector<8x8xf32>
    %83 = arith.truncf %82 : vector<8x8xf32> to vector<8x8xbf16>
    %cst_28 = arith.constant dense<0.000000e+00> : vector<8x8xf32>
    %84 = tpu.matmul %83, %67, %cst_28 {dimension_numbers = #tpu.dot_dimension_numbers<[1], [0], [0], [1], [0, 0, 1, 1], [], []>} : vector<8x8xbf16>, vector<8x8xbf16>, vector<8x8xf32> -> vector<8x8xf32>
    %c0_29 = arith.constant 0 : index
    %c16 = arith.constant 16 : index
    %85 = vector.load %arg16[%c0_29, %c16] : memref<8x32xf32, #tpu.memory_space<vmem>>, vector<8x8xf32>
    tpu.vector_store %arg16[%c0_29, %c16], %84 {strides = array<i32>} : memref<8x32xf32, #tpu.memory_space<vmem>>, vector<8x8xf32>,
    %86 = vector.extract_strided_slice %7 {offsets = [0, 24], sizes = [8, 8], strides = [1, 1]} : vector<8x96xf32> to vector<8x8xf32>
    %87 = arith.truncf %86 : vector<8x8xf32> to vector<8x8xbf16>
    %88 = vector.extract_strided_slice %7 {offsets = [0, 56], sizes = [8, 8], strides = [1, 1]} : vector<8x96xf32> to vector<8x8xf32>
    %89 = arith.truncf %88 : vector<8x8xf32> to vector<8x8xbf16>
    %90 = vector.extract_strided_slice %7 {offsets = [0, 88], sizes = [8, 8], strides = [1, 1]} : vector<8x96xf32> to vector<8x8xf32>
    %91 = arith.truncf %90 : vector<8x8xf32> to vector<8x8xbf16>
    %cst_30 = arith.constant dense<0.000000e+00> : vector<8x8xf32>
    %92 = tpu.matmul %87, %89, %cst_30 {dimension_numbers = #tpu.dot_dimension_numbers<[1], [1], [0], [0], [0, 0, 1, 0], [], []>} : vector<8x8xbf16>, vector<8x8xbf16>, vector<8x8xf32> -> vector<8x8xf32>
    %cst_31 = arith.constant 0.353553385 : f32
    %93 = vector.broadcast %cst_31 : f32 to vector<8x8xf32>
    %94 = arith.mulf %92, %93 : vector<8x8xf32>
    %95 = vector.broadcast %13 : vector<1x8xf32> to vector<8x8xf32>
    %96 = arith.addf %94, %95 : vector<8x8xf32>
    %cst_32 = arith.constant dense<0xFF800000> : vector<8xf32>
    %97 = vector.multi_reduction <maximumf>, %96, %cst_32 [1] : vector<8x8xf32> to vector<8xf32>
    %98 = vector.shape_cast %97 : vector<8xf32> to vector<8x1xf32>
    %99 = vector.broadcast %98 : vector<8x1xf32> to vector<8x8xf32>
    %100 = arith.subf %96, %99 : vector<8x8xf32>
    %101 = math.exp %100 : vector<8x8xf32>
    %cst_33 = arith.constant dense<0.000000e+00> : vector<8xf32>
    %102 = vector.multi_reduction <add>, %101, %cst_33 [1] : vector<8x8xf32> to vector<8xf32>
    %103 = vector.shape_cast %102 : vector<8xf32> to vector<8x1xf32>
    %104 = tpu.reciprocal %103 {approx = true} : vector<8x1xf32> -> vector<8x1xf32>
    %105 = vector.broadcast %104 : vector<8x1xf32> to vector<8x8xf32>
    %106 = arith.mulf %101, %105 : vector<8x8xf32>
    %107 = arith.truncf %106 : vector<8x8xf32> to vector<8x8xbf16>
    %cst_34 = arith.constant dense<0.000000e+00> : vector<8x8xf32>
    %108 = tpu.matmul %107, %91, %cst_34 {dimension_numbers = #tpu.dot_dimension_numbers<[1], [0], [0], [1], [0, 0, 1, 1], [], []>} : vector<8x8xbf16>, vector<8x8xbf16>, vector<8x8xf32> -> vector<8x8xf32>
    %c0_35 = arith.constant 0 : index
    %c24 = arith.constant 24 : index
    %109 = vector.load %arg16[%c0_35, %c24] : memref<8x32xf32, #tpu.memory_space<vmem>>, vector<8x8xf32>
    tpu.vector_store %arg16[%c0_35, %c24], %108 {strides = array<i32>} : memref<8x32xf32, #tpu.memory_space<vmem>>, vector<8x8xf32>,
    %c0_36 = arith.constant 0 : index
    %c0_37 = arith.constant 0 : index
    %110 = vector.load %arg16[%c0_36, %c0_37] : memref<8x32xf32, #tpu.memory_space<vmem>>, vector<8x32xf32>
    %111 = arith.truncf %110 : vector<8x32xf32> to vector<8x32xbf16>
    %c0_38 = arith.constant 0 : index
    %c0_39 = arith.constant 0 : index
    %112 = vector.load %arg5[%c0_38, %c0_39] : memref<32x32xbf16, #tpu.memory_space<vmem>>, vector<32x32xbf16>
    %cst_40 = arith.constant dense<0.000000e+00> : vector<8x32xf32>
    %113 = tpu.matmul %111, %112, %cst_40 {dimension_numbers = #tpu.dot_dimension_numbers<[1], [0], [0], [1], [0, 0, 1, 1], [], []>} : vector<8x32xbf16>, vector<32x32xbf16>, vector<8x32xf32> -> vector<8x32xf32>
    %c0_41 = arith.constant 0 : index
    %c0_42 = arith.constant 0 : index
    %114 = vector.load %arg6[%c0_41, %c0_42] : memref<1x32xf32, #tpu.memory_space<vmem>>, vector<1x32xf32>
    %115 = vector.broadcast %114 : vector<1x32xf32> to vector<8x32xf32>
    %116 = arith.addf %113, %115 : vector<8x32xf32>
    %117 = arith.addf %116, %1 : vector<8x32xf32>
    %c0_43 = arith.constant 0 : index
    %c0_44 = arith.constant 0 : index
    %118 = vector.load %arg7[%c0_43, %c0_44] : memref<1x32xf32, #tpu.memory_space<vmem>>, vector<1x32xf32>
    %c0_45 = arith.constant 0 : index
    %c0_46 = arith.constant 0 : index
    %119 = vector.load %arg8[%c0_45, %c0_46] : memref<1x32xf32, #tpu.memory_space<vmem>>, vector<1x32xf32>
    %cst_47 = arith.constant dense<0.000000e+00> : vector<8xf32>
    %120 = vector.multi_reduction <add>, %117, %cst_47 [1] : vector<8x32xf32> to vector<8xf32>
    %121 = vector.shape_cast %120 : vector<8xf32> to vector<8x1xf32>
    %cst_48 = arith.constant 3.200000e+01 : f32
    %122 = vector.broadcast %cst_48 : f32 to vector<8x1xf32>
    %123 = arith.divf %121, %122 : vector<8x1xf32>
    %124 = vector.broadcast %123 : vector<8x1xf32> to vector<8x32xf32>
    %125 = arith.subf %117, %124 : vector<8x32xf32>
    %126 = arith.mulf %125, %125 : vector<8x32xf32>
    %cst_49 = arith.constant dense<0.000000e+00> : vector<8xf32>
    %127 = vector.multi_reduction <add>, %126, %cst_49 [1] : vector<8x32xf32> to vector<8xf32>
    %128 = vector.shape_cast %127 : vector<8xf32> to vector<8x1xf32>
    %cst_50 = arith.constant 3.200000e+01 : f32
    %129 = vector.broadcast %cst_50 : f32 to vector<8x1xf32>
    %130 = arith.divf %128, %129 : vector<8x1xf32>
    %cst_51 = arith.constant 9.99999996E-13 : f32
    %131 = vector.broadcast %cst_51 : f32 to vector<8x1xf32>
    %132 = arith.addf %130, %131 : vector<8x1xf32>
    %133 = math.rsqrt %132 : vector<8x1xf32>
    %134 = vector.broadcast %133 : vector<8x1xf32> to vector<8x32xf32>
    %135 = arith.mulf %125, %134 : vector<8x32xf32>
    %136 = vector.broadcast %118 : vector<1x32xf32> to vector<8x32xf32>
    %137 = arith.mulf %135, %136 : vector<8x32xf32>
    %138 = vector.broadcast %119 : vector<1x32xf32> to vector<8x32xf32>
    %139 = arith.addf %137, %138 : vector<8x32xf32>
    %140 = arith.truncf %139 : vector<8x32xf32> to vector<8x32xbf16>
    %cst_52 = arith.constant 0.000000e+00 : f32
    %141 = vector.broadcast %cst_52 : f32 to vector<8x32xf32>
    %c0_53 = arith.constant 0 : index
    %c0_54 = arith.constant 0 : index
    %142 = vector.load %arg9[%c0_53, %c0_54] : memref<32x64xbf16, #tpu.memory_space<vmem>>, vector<32x64xbf16>
    %cst_55 = arith.constant dense<0.000000e+00> : vector<8x64xf32>
    %143 = tpu.matmul %140, %142, %cst_55 {dimension_numbers = #tpu.dot_dimension_numbers<[1], [0], [0], [1], [0, 0, 1, 1], [], []>} : vector<8x32xbf16>, vector<32x64xbf16>, vector<8x64xf32> -> vector<8x64xf32>
    %c0_56 = arith.constant 0 : index
    %c0_57 = arith.constant 0 : index
    %144 = vector.load %arg10[%c0_56, %c0_57] : memref<1x64xf32, #tpu.memory_space<vmem>>, vector<1x64xf32>
    %145 = vector.broadcast %144 : vector<1x64xf32> to vector<8x64xf32>
    %146 = arith.addf %143, %145 : vector<8x64xf32>
    %cst_58 = arith.constant 5.000000e-01 : f32
    %147 = vector.broadcast %cst_58 : f32 to vector<8x64xf32>
    %148 = arith.mulf %147, %146 : vector<8x64xf32>
    %cst_59 = arith.constant 4.471500e-02 : f32
    %149 = vector.broadcast %cst_59 : f32 to vector<8x64xf32>
    %150 = arith.mulf %149, %146 : vector<8x64xf32>
    %151 = arith.mulf %150, %146 : vector<8x64xf32>
    %152 = arith.mulf %151, %146 : vector<8x64xf32>
    %153 = arith.addf %146, %152 : vector<8x64xf32>
    %cst_60 = arith.constant 0.797884583 : f32
    %154 = vector.broadcast %cst_60 : f32 to vector<8x64xf32>
    %155 = arith.mulf %154, %153 : vector<8x64xf32>
    %156 = math.tanh %155 : vector<8x64xf32>
    %cst_61 = arith.constant 1.000000e+00 : f32
    %157 = vector.broadcast %cst_61 : f32 to vector<8x64xf32>
    %158 = arith.addf %157, %156 : vector<8x64xf32>
    %159 = arith.mulf %148, %158 : vector<8x64xf32>
    %160 = arith.truncf %159 : vector<8x64xf32> to vector<8x64xbf16>
    %c0_62 = arith.constant 0 : index
    %c0_63 = arith.constant 0 : index
    %161 = vector.load %arg11[%c0_62, %c0_63] : memref<64x32xbf16, #tpu.memory_space<vmem>>, vector<64x32xbf16>
    %cst_64 = arith.constant dense<0.000000e+00> : vector<8x32xf32>
    %162 = tpu.matmul %160, %161, %cst_64 {dimension_numbers = #tpu.dot_dimension_numbers<[1], [0], [0], [1], [0, 0, 1, 1], [], []>} : vector<8x64xbf16>, vector<64x32xbf16>, vector<8x32xf32> -> vector<8x32xf32>
    %163 = arith.addf %141, %162 : vector<8x32xf32>
    %c0_65 = arith.constant 0 : index
    %c0_66 = arith.constant 0 : index
    %164 = vector.load %arg12[%c0_65, %c0_66] : memref<1x32xf32, #tpu.memory_space<vmem>>, vector<1x32xf32>
    %165 = vector.broadcast %164 : vector<1x32xf32> to vector<8x32xf32>
    %166 = arith.addf %163, %165 : vector<8x32xf32>
    %167 = arith.addf %166, %139 : vector<8x32xf32>
    %c0_67 = arith.constant 0 : index
    %c0_68 = arith.constant 0 : index
    %168 = vector.load %arg13[%c0_67, %c0_68] : memref<1x32xf32, #tpu.memory_space<vmem>>, vector<1x32xf32>
    %c0_69 = arith.constant 0 : index
    %c0_70 = arith.constant 0 : index
    %169 = vector.load %arg14[%c0_69, %c0_70] : memref<1x32xf32, #tpu.memory_space<vmem>>, vector<1x32xf32>
    %cst_71 = arith.constant dense<0.000000e+00> : vector<8xf32>
    %170 = vector.multi_reduction <add>, %167, %cst_71 [1] : vector<8x32xf32> to vector<8xf32>
    %171 = vector.shape_cast %170 : vector<8xf32> to vector<8x1xf32>
    %cst_72 = arith.constant 3.200000e+01 : f32
    %172 = vector.broadcast %cst_72 : f32 to vector<8x1xf32>
    %173 = arith.divf %171, %172 : vector<8x1xf32>
    %174 = vector.broadcast %173 : vector<8x1xf32> to vector<8x32xf32>
    %175 = arith.subf %167, %174 : vector<8x32xf32>
    %176 = arith.mulf %175, %175 : vector<8x32xf32>
    %cst_73 = arith.constant dense<0.000000e+00> : vector<8xf32>
    %177 = vector.multi_reduction <add>, %176, %cst_73 [1] : vector<8x32xf32> to vector<8xf32>
    %178 = vector.shape_cast %177 : vector<8xf32> to vector<8x1xf32>
    %cst_74 = arith.constant 3.200000e+01 : f32
    %179 = vector.broadcast %cst_74 : f32 to vector<8x1xf32>
    %180 = arith.divf %178, %179 : vector<8x1xf32>
    %cst_75 = arith.constant 9.99999996E-13 : f32
    %181 = vector.broadcast %cst_75 : f32 to vector<8x1xf32>
    %182 = arith.addf %180, %181 : vector<8x1xf32>
    %183 = math.rsqrt %182 : vector<8x1xf32>
    %184 = vector.broadcast %183 : vector<8x1xf32> to vector<8x32xf32>
    %185 = arith.mulf %175, %184 : vector<8x32xf32>
    %186 = vector.broadcast %168 : vector<1x32xf32> to vector<8x32xf32>
    %187 = arith.mulf %185, %186 : vector<8x32xf32>
    %188 = vector.broadcast %169 : vector<1x32xf32> to vector<8x32xf32>
    %189 = arith.addf %187, %188 : vector<8x32xf32>
    %c0_76 = arith.constant 0 : index
    %c0_77 = arith.constant 0 : index
    %c0_78 = arith.constant 0 : index
    %190 = vector.load %arg15[%c0_76, %c0_77, %c0_78] : memref<1x8x32xf32, #tpu.memory_space<vmem>>, vector<1x8x32xf32>
    %191 = vector.shape_cast %190 : vector<1x8x32xf32> to vector<8x32xf32>
    %192 = vector.shape_cast %189 : vector<8x32xf32> to vector<1x8x32xf32>
    tpu.vector_store %arg15[%c0_76, %c0_77, %c0_78], %192 {strides = array<i32>} : memref<1x8x32xf32, #tpu.memory_space<vmem>>, vector<1x8x32xf32>,
    return
  }
  func.func @transform_0(%arg0: i32) -> (i32, i32, i32) {
    %c0_i32 = arith.constant 0 : i32
    %c0_i32_0 = arith.constant 0 : i32
    %c0_i32_1 = arith.constant 0 : i32
    return %arg0, %c0_i32, %c0_i32_0 : i32, i32, i32
  }
  func.func @transform_1(%arg0: i32) -> (i32, i32, i32) {
    %c0_i32 = arith.constant 0 : i32
    %c0_i32_0 = arith.constant 0 : i32
    %c0_i32_1 = arith.constant 0 : i32
    return %arg0, %c0_i32, %c0_i32_0 : i32, i32, i32
  }
  func.func @transform_2(%arg0: i32) -> (i32, i32) {
    %c0_i32 = arith.constant 0 : i32
    %c0_i32_0 = arith.constant 0 : i32
    %c0_i32_1 = arith.constant 0 : i32
    return %c0_i32, %c0_i32_0 : i32, i32
  }
  func.func @transform_3(%arg0: i32) -> (i32, i32) {
    %c0_i32 = arith.constant 0 : i32
    %c0_i32_0 = arith.constant 0 : i32
    %c0_i32_1 = arith.constant 0 : i32
    return %c0_i32, %c0_i32_0 : i32, i32
  }
  func.func @transform_4(%arg0: i32) -> (i32, i32) {
    %c0_i32 = arith.constant 0 : i32
    %c0_i32_0 = arith.constant 0 : i32
    %c0_i32_1 = arith.constant 0 : i32
    return %c0_i32, %c0_i32_0 : i32, i32
  }
  func.func @transform_5(%arg0: i32) -> (i32, i32) {
    %c0_i32 = arith.constant 0 : i32
    %c0_i32_0 = arith.constant 0 : i32
    %c0_i32_1 = arith.constant 0 : i32
    return %c0_i32, %c0_i32_0 : i32, i32
  }
  func.func @transform_6(%arg0: i32) -> (i32, i32) {
    %c0_i32 = arith.constant 0 : i32
    %c0_i32_0 = arith.constant 0 : i32
    %c0_i32_1 = arith.constant 0 : i32
    return %c0_i32, %c0_i32_0 : i32, i32
  }
  func.func @transform_7(%arg0: i32) -> (i32, i32) {
    %c0_i32 = arith.constant 0 : i32
    %c0_i32_0 = arith.constant 0 : i32
    %c0_i32_1 = arith.constant 0 : i32
    return %c0_i32, %c0_i32_0 : i32, i32
  }
  func.func @transform_8(%arg0: i32) -> (i32, i32) {
    %c0_i32 = arith.constant 0 : i32
    %c0_i32_0 = arith.constant 0 : i32
    %c0_i32_1 = arith.constant 0 : i32
    return %c0_i32, %c0_i32_0 : i32, i32
  }
  func.func @transform_9(%arg0: i32) -> (i32, i32) {
    %c0_i32 = arith.constant 0 : i32
    %c0_i32_0 = arith.constant 0 : i32
    %c0_i32_1 = arith.constant 0 : i32
    return %c0_i32, %c0_i32_0 : i32, i32
  }
  func.func @transform_10(%arg0: i32) -> (i32, i32) {
    %c0_i32 = arith.constant 0 : i32
    %c0_i32_0 = arith.constant 0 : i32
    %c0_i32_1 = arith.constant 0 : i32
    return %c0_i32, %c0_i32_0 : i32, i32
  }
  func.func @transform_11(%arg0: i32) -> (i32, i32) {
    %c0_i32 = arith.constant 0 : i32
    %c0_i32_0 = arith.constant 0 : i32
    %c0_i32_1 = arith.constant 0 : i32
    return %c0_i32, %c0_i32_0 : i32, i32
  }
  func.func @transform_12(%arg0: i32) -> (i32, i32) {
    %c0_i32 = arith.constant 0 : i32
    %c0_i32_0 = arith.constant 0 : i32
    %c0_i32_1 = arith.constant 0 : i32
    return %c0_i32, %c0_i32_0 : i32, i32
  }
  func.func @transform_13(%arg0: i32) -> (i32, i32) {
    %c0_i32 = arith.constant 0 : i32
    %c0_i32_0 = arith.constant 0 : i32
    %c0_i32_1 = arith.constant 0 : i32
    return %c0_i32, %c0_i32_0 : i32, i32
  }
  func.func @transform_14(%arg0: i32) -> (i32, i32, i32) {
    %c0_i32 = arith.constant 0 : i32
    %c0_i32_0 = arith.constant 0 : i32
    %c0_i32_1 = arith.constant 0 : i32
    return %arg0, %c0_i32, %c0_i32_0 : i32, i32, i32
  }
}

</mosaic_0001>

<llo_original>
// kernel: bert_forward.4
$region0: #{bert_forward.4}
  #allocation0 [shape = 'u32[]', space=smem, size = 0x4, offset = 0x4, fixed_abs, tag = 'smem constant byte address 0x4 - core index']
  #allocation1 [shape = 'u32[144,128]{1,0:T(1,128)}', space=vmem, size = 0x12000, scoped, tag = 'internal scratch']
  %s0 = inlined_call_operand.vmem [shape: f32[2,8,32], index: 0, kind: input, shape index: {}]
  %s1 = inlined_call_operand.vmem [shape: f32[1,32], index: 1, kind: input, shape index: {}]
  %s2 = inlined_call_operand.vmem [shape: f32[1,32], index: 2, kind: input, shape index: {}]
  %s3 = inlined_call_operand.vmem [shape: f32[2,8,32], index: 3, kind: output, shape index: {}]
  %s4 = sld [smem:[#allocation0]]
  $region45: #{bert_forward.4} parent=0
    _
  %s6 = ssub.s32 1, %s4
  %s7 = scalar_select 0, %s6, %s4
  loop: start=0, step=1, limit=4
  $region2: #{bert_forward.4} parent=0 // loop_pre_header
    _
  $region3: #{bert_forward.4} parent=0 // loop_header
    %s9 = sphi 0, %s13
    %p10 = scmp.ge.s32.totalorder %s9, 4
    %s19 = sphi 0, %s21
    %s22 = sphi 0, %s19
    %s23 = sphi 0, %s22
    %s39 = sphi 0, %s23
    %s43 = sphi 0, %s43
    %s45 = sphi 0, %s43
    %s46 = sphi 0, %s45
    %s60 = sphi 0, %s46
    %s64 = sphi 0, %s64
    %s66 = sphi 0, %s64
    %s67 = sphi 0, %s66
    %s81 = sphi 0, %s67
    %s87 = sphi 0, %s89
    %s90 = sphi 0, %s87
    %s91 = sphi 0, %s90
    %s107 = sphi 0, %s91
  $region4: #{bert_forward.4} parent=0 // loop_header_branch
    %12 = sbr.rel (%p10) target = $region8
  $region5: #{bert_forward.4} parent=0 // loop_body
    %s14 = ssub.s32 %s9, 1
    %s15 = ssub.s32 %s9, 2
    %s16 = sadd.s32 %s9, 1
    %s17 = ssub.s32 %s9, %s16
    %p18 = scmp.eq.s32.totalorder %s17, 0
    %s20 = sadd.s32 %s19, 1
    %s21 = scalar_select %p18, %s19, %s20
    %p24 = pneg %p18
    %p25 = scmp.eq.s32.totalorder %s9, 1
    %p26 = por %p24, %p25
    %p27 = scmp.ne.s32.totalorder %s19, %s22
    %p28 = scmp.eq.s32.totalorder %s9, 0
    %p29 = por %p27, %p28
    %p30 = scmp.ne.s32.totalorder %s19, %s22
    %p31 = scmp.eq.s32.totalorder %s14, 1
    %p32 = por %p30, %p31
    %p33 = scmp.ne.s32.totalorder %s22, %s23
    %p34 = scmp.eq.s32.totalorder %s14, 0
    %p35 = por %p33, %p34
    %p36 = scmp.ne.s32.totalorder %s22, %s23
    %p37 = scmp.eq.s32.totalorder %s15, 1
    %p38 = por %p36, %p37
    %p40 = scmp.ne.s32.totalorder %s23, %s39
    %p41 = scmp.eq.s32.totalorder %s15, 0
    %p42 = por %p40, %p41
    %s44 = sadd.s32 %s43, 1
    %p47 = scmp.eq.s32.totalorder %s9, 1
    %p48 = scmp.ne.s32.totalorder %s43, %s45
    %p49 = scmp.eq.s32.totalorder %s9, 0
    %p50 = por %p48, %p49
    %p51 = scmp.ne.s32.totalorder %s43, %s45
    %p52 = scmp.eq.s32.totalorder %s14, 1
    %p53 = por %p51, %p52
    %p54 = scmp.ne.s32.totalorder %s45, %s46
    %p55 = scmp.eq.s32.totalorder %s14, 0
    %p56 = por %p54, %p55
    %p57 = scmp.ne.s32.totalorder %s45, %s46
    %p58 = scmp.eq.s32.totalorder %s15, 1
    %p59 = por %p57, %p58
    %p61 = scmp.ne.s32.totalorder %s46, %s60
    %p62 = scmp.eq.s32.totalorder %s15, 0
    %p63 = por %p61, %p62
    %s65 = sadd.s32 %s64, 1
    %p68 = scmp.eq.s32.totalorder %s9, 1
    %p69 = scmp.ne.s32.totalorder %s64, %s66
    %p70 = scmp.eq.s32.totalorder %s9, 0
    %p71 = por %p69, %p70
    %p72 = scmp.ne.s32.totalorder %s64, %s66
    %p73 = scmp.eq.s32.totalorder %s14, 1
    %p74 = por %p72, %p73
    %p75 = scmp.ne.s32.totalorder %s66, %s67
    %p76 = scmp.eq.s32.totalorder %s14, 0
    %p77 = por %p75, %p76
    %p78 = scmp.ne.s32.totalorder %s66, %s67
    %p79 = scmp.eq.s32.totalorder %s15, 1
    %p80 = por %p78, %p79
    %p82 = scmp.ne.s32.totalorder %s67, %s81
    %p83 = scmp.eq.s32.totalorder %s15, 0
    %p84 = por %p82, %p83
    %s85 = ssub.s32 %s9, %s16
    %p86 = scmp.eq.s32.totalorder %s85, 0
    %s88 = sadd.s32 %s87, 1
    %s89 = scalar_select %p86, %s87, %s88
    %p92 = pneg %p86
    %p93 = scmp.eq.s32.totalorder %s9, 1
    %p94 = por %p92, %p93
    %p95 = scmp.ne.s32.totalorder %s87, %s90
    %p96 = scmp.eq.s32.totalorder %s9, 0
    %p97 = por %p95, %p96
    %p98 = scmp.ne.s32.totalorder %s87, %s90
    %p99 = scmp.eq.s32.totalorder %s14, 1
    %p100 = por %p98, %p99
    %p101 = scmp.ne.s32.totalorder %s90, %s91
    %p102 = scmp.eq.s32.totalorder %s14, 0
    %p103 = por %p101, %p102
    %p104 = scmp.ne.s32.totalorder %s90, %s91
    %p105 = scmp.eq.s32.totalorder %s15, 1
    %p106 = por %p104, %p105
    %p108 = scmp.ne.s32.totalorder %s91, %s107
    %p109 = scmp.eq.s32.totalorder %s15, 0
    %p110 = por %p108, %p109
    %p111 = scmp.le.s32.totalorder 1, %s9
    %p112 = scmp.lt.s32.totalorder %s9, 3
    %p113 = pnand %p111, %p112
    %p114 = pneg %p113
    // Predicated region
    $region9: #{bert_forward.4} parent=5 // pred_check
      _
    $region10: #{bert_forward.4} parent=5 // pred_check_branch
      %116 = sbr.rel (%p113) target = $region12
    $region11: #{bert_forward.4} parent=5 // pred_region
      %s117 = ssub.s32 %s9, 1
      // Predicated region
      $region13: #{bert_forward.4} parent=11 // pred_check
        %p118 = pneg %p56
      $region14: #{bert_forward.4} parent=11 // pred_check_branch
        %120 = sbr.rel (%p118) target = $region16
      $region15: #{bert_forward.4} parent=11 // pred_region
        _
      $region16: #{bert_forward.4} parent=11 // pred_fallthru
        _
      // Predicated region
      $region17: #{bert_forward.4} parent=11 // pred_check
        %p121 = pneg %p77
      $region18: #{bert_forward.4} parent=11 // pred_check_branch
        %123 = sbr.rel (%p121) target = $region20
      $region19: #{bert_forward.4} parent=11 // pred_region
        _
      $region20: #{bert_forward.4} parent=11 // pred_fallthru
        _
    $region12: #{bert_forward.4} parent=5 // pred_fallthru
      _
    %p124 = scmp.lt.s32.totalorder %s9, 2
    // Predicated region
    $region21: #{bert_forward.4} parent=5 // pred_check
      %p125 = pneg %p124
    $region22: #{bert_forward.4} parent=5 // pred_check_branch
      %127 = sbr.rel (%p125) target = $region24
    $region23: #{bert_forward.4} parent=5 // pred_region
      // Predicated region
      $region25: #{bert_forward.4} parent=23 // pred_check
        %p128 = pneg %p29
      $region26: #{bert_forward.4} parent=23 // pred_check_branch
        %130 = sbr.rel (%p128) target = $region28
      $region27: #{bert_forward.4} parent=23 // pred_region
        %p131 = scmp.lt.s32.totalorder %s9, 1
        %s132 = scalar_select %p131, %s9, 1
        %s133 = smul.addr %s132, 8
        %s134 = scalar_lea.vmem %s0, %s133
      $region28: #{bert_forward.4} parent=23 // pred_fallthru
        _
    $region24: #{bert_forward.4} parent=5 // pred_fallthru
      _
    %p135 = scmp.le.s32.totalorder 1, %s9
    %p136 = scmp.lt.s32.totalorder %s9, 3
    %p137 = pnand %p135, %p136
    %p138 = pneg %p137
    // Predicated region
    $region29: #{bert_forward.4} parent=5 // pred_check
      _
    $region30: #{bert_forward.4} parent=5 // pred_check_branch
      %140 = sbr.rel (%p137) target = $region32
    $region31: #{bert_forward.4} parent=5 // pred_region
      %s141 = ssub.s32 %s9, 1
      %p142 = scmp.lt.s32.totalorder %s14, 1
      %s143 = scalar_select %p142, %s14, 1
      %s144 = smul.addr %s143, 8
      %s145 = scalar_lea.vmem %s0, %s144
      %p146 = pneg %p35
      %p147 = pneg %p32
      %p148 = pneg %p56
      %p149 = pneg %p53
      %p150 = pneg %p77
      %p151 = pneg %p74
      %p152 = pneg %p103
      %p153 = pneg %p100
      %p154 = scmp.lt.s32.totalorder %s14, 1
      %s155 = scalar_select %p154, %s14, 1
      %s156 = smul.addr %s155, 8
      %s157 = scalar_lea.vmem %s3, %s156
      %p158 = scmp.lt.s32.totalorder %s14, 1
      %s159 = scalar_select %p158, %s14, 1
      %s160 = smul.addr %s159, 8
      %s161 = scalar_lea.vmem %s0, %s160
      %p162 = scmp.lt.s32.totalorder %s14, 1
      %s163 = scalar_select %p162, %s14, 1
      %s164 = smul.addr %s163, 8
      %s165 = scalar_lea.vmem %s3, %s164
      %v166 = vld [vmem:[%s161] sm:$0xff]
      %v167 = vld [vmem:[%s1] sm:$0x1]
      %v168 = vld [vmem:[%s2] sm:$0x1]
      %vm169 = vcmask 261120
      %v170 = vsel %vm169, %v166, 0.0
      %171 = vadd.xlane.f32.xlu0 %v170
      %v172 = vpop.xlane.xlu0 %171
      %v173 = vrcp.pop 32.0
      %v174 = vmul.f32 %v172, %v173
      %v175 = vsub.f32 %v166, %v174
      %v176 = vmul.f32 %v175, %v175
      %v177 = vsel %vm169, %v176, 0.0
      %178 = vadd.xlane.f32.xlu0 %v177
      %v179 = vpop.xlane.xlu0 %178
      %v180 = vmul.f32 %v179, %v173
      %v181 = vadd.f32 %v180, 1e-12
      %v182 = vrsqrt.pop %v181
      %v183 = vmul.f32 %v175, %v182
      %v185 = vlaneseq
      %v186 = vshrl.u32 %v185, 7
      %v187 = vsub.s32 0, %v186
      %v188 = vrot.slane %v167, %v187
      %v190 = vmul.f32 %v183, %v188
      %v192 = vlaneseq
      %v193 = vshrl.u32 %v192, 7
      %v194 = vsub.s32 0, %v193
      %v195 = vrot.slane %v168, %v194
      %v197 = vadd.f32 %v190, %v195
      %198 = vst.msk [vmem:[%s165] sm:$0xff] %vm169, %v197
      %p199 = scmp.lt.s32.totalorder %s14, 1
      %s200 = scalar_select %p199, %s14, 1
      %s201 = smul.addr %s200, 8
      %s202 = scalar_lea.vmem %s3, %s201
      // Predicated region
      $region33: #{bert_forward.4} parent=31 // pred_check
        %p203 = pneg %p100
      $region34: #{bert_forward.4} parent=31 // pred_check_branch
        %205 = sbr.rel (%p203) target = $region36
      $region35: #{bert_forward.4} parent=31 // pred_region
        _
      $region36: #{bert_forward.4} parent=31 // pred_fallthru
        _
    $region32: #{bert_forward.4} parent=5 // pred_fallthru
      _
    %p206 = scmp.le.s32.totalorder 2, %s9
    // Predicated region
    $region37: #{bert_forward.4} parent=5 // pred_check
      %p207 = pneg %p206
    $region38: #{bert_forward.4} parent=5 // pred_check_branch
      %209 = sbr.rel (%p207) target = $region40
    $region39: #{bert_forward.4} parent=5 // pred_region
      %s210 = ssub.s32 %s9, 2
      // Predicated region
      $region41: #{bert_forward.4} parent=39 // pred_check
        %p211 = pneg %p106
      $region42: #{bert_forward.4} parent=39 // pred_check_branch
        %213 = sbr.rel (%p211) target = $region44
      $region43: #{bert_forward.4} parent=39 // pred_region
        %p214 = scmp.lt.s32.totalorder %s15, 1
        %s215 = scalar_select %p214, %s15, 1
        %s216 = smul.addr %s215, 8
        %s217 = scalar_lea.vmem %s3, %s216
      $region44: #{bert_forward.4} parent=39 // pred_fallthru
        _
    $region40: #{bert_forward.4} parent=5 // pred_fallthru
      _
  $region6: #{bert_forward.4} parent=0 // loop_footer
    %s13 = sadd.s32 1, %s9
  $region7: #{bert_forward.4} parent=0 // loop_footer_branch
    %8 = sbr.rel target = $region3
  $region8: #{bert_forward.4} parent=0 // loop_exit
    _

// kernel: bert_forward.7
$region0: #{bert_forward.7}
  #allocation0 [shape = 'u32[]', space=smem, size = 0x4, offset = 0x4, fixed_abs, tag = 'smem constant byte address 0x4 - core index']
  #allocation1 [shape = 'u32[144,128]{1,0:T(1,128)}', space=vmem, size = 0x12000, scoped, tag = 'internal scratch']
  %s0 = inlined_call_operand.vmem [shape: f32[2,32], index: 0, kind: input, shape index: {}]
  %s1 = inlined_call_operand.vmem [shape: bf16[32,32], index: 1, kind: input, shape index: {}]
  %s2 = inlined_call_operand.vmem [shape: f32[1,32], index: 2, kind: input, shape index: {}]
  %s3 = inlined_call_operand.vmem [shape: bf16[32,2], index: 3, kind: input, shape index: {}]
  %s4 = inlined_call_operand.vmem [shape: f32[1,2], index: 4, kind: input, shape index: {}]
  %s5 = inlined_call_operand.vmem [shape: f32[2,2], index: 5, kind: input, shape index: {}]
  %s6 = inlined_call_operand.hbm [shape: f32[2,2], index: 6, kind: output, shape index: {0}]
  %s7 = inlined_call_operand.hbm [shape: f32[1,1], index: 7, kind: output, shape index: {1}]
  %8 = xla_tuple %s6, %s7
  %s9 = sld [smem:[#allocation0]]
  $region42: #{bert_forward.7} parent=0
    _
  %s11 = ssub.s32 1, %s9
  %s12 = scalar_select 0, %s11, %s9
  $region1: #{bert_forward.7} parent=0
    #allocation2 [shape = 'u8[1024]{0}', space=vmem, size = 0x400, scoped, tag = 'output window, operand 0, single buffered']
    #allocation3 [shape = 's32[1]{0}', space=sflag, size = 0x4, scoped, tag = 'scoped memory for bert_forward.7']
    #allocation4 [shape = 'u8[512]{0}', space=vmem, size = 0x400, scoped, tag = 'output window, operand 1, single buffered']
    #allocation5 [shape = 's32[1]{0}', space=sflag, size = 0x4, scoped, tag = 'scoped memory for bert_forward.7']
    %13 = vsyncpa [#allocation3], 0
    %14 = vsyncpa [#allocation5], 0
    // Predicated region
    $region2: #{bert_forward.7} parent=1 // pred_check
      _
    $region3: #{bert_forward.7} parent=1 // pred_check_branch
      %16 = sbr.rel (0) target = $region5
    $region4: #{bert_forward.7} parent=1 // pred_region
      _
    $region5: #{bert_forward.7} parent=1 // pred_fallthru
      _
    // Predicated region
    $region6: #{bert_forward.7} parent=1 // pred_check
      _
    $region7: #{bert_forward.7} parent=1 // pred_check_branch
      %18 = sbr.rel (0) target = $region9
    $region8: #{bert_forward.7} parent=1 // pred_region
      _
    $region9: #{bert_forward.7} parent=1 // pred_fallthru
      _
    // Predicated region
    $region10: #{bert_forward.7} parent=1 // pred_check
      _
    $region11: #{bert_forward.7} parent=1 // pred_check_branch
      %20 = sbr.rel (0) target = $region13
    $region12: #{bert_forward.7} parent=1 // pred_region
      _
    $region13: #{bert_forward.7} parent=1 // pred_fallthru
      _
    // Predicated region
    $region14: #{bert_forward.7} parent=1 // pred_check
      _
    $region15: #{bert_forward.7} parent=1 // pred_check_branch
      %22 = sbr.rel (0) target = $region17
    $region16: #{bert_forward.7} parent=1 // pred_region
      _
    $region17: #{bert_forward.7} parent=1 // pred_fallthru
      _
    // Predicated region
    $region18: #{bert_forward.7} parent=1 // pred_check
      _
    $region19: #{bert_forward.7} parent=1 // pred_check_branch
      %24 = sbr.rel (0) target = $region21
    $region20: #{bert_forward.7} parent=1 // pred_region
      _
    $region21: #{bert_forward.7} parent=1 // pred_fallthru
      _
    // Predicated region
    $region22: #{bert_forward.7} parent=1 // pred_check
      _
    $region23: #{bert_forward.7} parent=1 // pred_check_branch
      %26 = sbr.rel (0) target = $region25
    $region24: #{bert_forward.7} parent=1 // pred_region
      _
    $region25: #{bert_forward.7} parent=1 // pred_fallthru
      _
    %v28 = vld [vmem:[%s0] sm:$0x3]
    %v29 = vpack.c.bf16 %v28, %v28
    %v30 = vld [vmem:[%s1] sm:$0xf]
    %v31 = vld [vmem:[%s1 + $0x4] sm:$0xf]
    %v32 = vld [vmem:[%s1 + $0x8] sm:$0xf]
    %v33 = vld [vmem:[%s1 + $0xc] sm:$0xf]
    %v34 = vld [vmem:[%s2] sm:$0x1]
    %v36 = vlaneseq
    %v37 = vshrl.u32 %v36, 7
    %v38 = vsub.s32 0, %v37
    %v39 = vrot.slane %v34, %v38
    %v45 = vunpack.c.l.b16 %v30
    %v46 = vunpack.c.l.b16 %v31
    %v47 = vunpack.c.l.b16 %v32
    %v48 = vunpack.c.l.b16 %v33
    %v49 = vpack.c.b16 %v46, %v45
    %v50 = vpack.c.b16 %v48, %v47
    %vm53 = vcmask 261120
    %v55 = vsel %vm53, %v29, 0
    %57 = vmatprep.subr.bf16.mxu0 0
    %58 = vmatpush1.bf16.msra.mxu0 %v49
    %59 = vmatprep.subr.bf16.mxu0 0
    %60 = vmatpush1.bf16.msra.mxu0 %v50
    %61 = vmatprep.subr.bf16.mxu0 0
    %62 = vmatpush1.bf16.msra.mxu0 0
    %63 = vmatprep.subr.bf16.mxu0 0
    %64 = vmatpush1.bf16.msra.mxu0 0
    %65 = vmatprep.subr.bf16.mxu0 0
    %66 = vmatpush1.bf16.msra.mxu0 0
    %67 = vmatprep.subr.bf16.mxu0 0
    %68 = vmatpush1.bf16.msra.mxu0 0
    %69 = vmatprep.subr.bf16.mxu0 0
    %70 = vmatpush1.bf16.msra.mxu0 0
    %71 = vmatprep.subr.bf16.mxu0 0
    %72 = vmatpush1.bf16.msra.mxu0 0
    %73 = vmatprep.subr.bf16.mxu0 0
    %74 = vmatpush1.bf16.msra.mxu0 0
    %75 = vmatprep.subr.bf16.mxu0 0
    %76 = vmatpush1.bf16.msra.mxu0 0
    %77 = vmatprep.subr.bf16.mxu0 0
    %78 = vmatpush1.bf16.msra.mxu0 0
    %79 = vmatprep.subr.bf16.mxu0 0
    %80 = vmatpush1.bf16.msra.mxu0 0
    %81 = vmatprep.subr.bf16.mxu0 0
    %82 = vmatpush1.bf16.msra.mxu0 0
    %83 = vmatprep.subr.bf16.mxu0 0
    %84 = vmatpush1.bf16.msra.mxu0 0
    %85 = vmatprep.subr.bf16.mxu0 0
    %86 = vmatpush1.bf16.msra.mxu0 0
    %87 = vmatprep.subr.bf16.mxu0 0
    %88 = vmatpush1.bf16.msra.mxu0 0
    %89 = vmatprep.mubr.bf16.mxu0 0
    %90 = vmatmul.mubr.bf16.gmra.mrb[0].mxu0 %v55
    %v91 = vpop.f32.mrb[0].mxu0
    %v92 = vadd.f32 %v39, %v91
    %v93 = vpop.f32.mrb[0].mxu0
    %v94 = vpop.f32.mrb[0].mxu0
    %v95 = vpop.f32.mrb[0].mxu0
    %96 = vdwg.mxu0
    %v97 = vtanh.pop %v92
    %v98 = vpack.c.bf16 %v97, %v97
    %v99 = vld [vmem:[%s3] sm:$0xf]
    %v100 = vld [vmem:[%s3 + $0x4] sm:$0xf]
    %v101 = vld [vmem:[%s3 + $0x8] sm:$0xf]
    %v102 = vld [vmem:[%s3 + $0xc] sm:$0xf]
    %v103 = vld [vmem:[%s4] sm:$0x1]
    %v105 = vlaneseq
    %v106 = vshrl.u32 %v105, 7
    %v107 = vsub.s32 0, %v106
    %v108 = vrot.slane %v103, %v107
    %v114 = vunpack.c.l.b16 %v99
    %v115 = vunpack.c.l.b16 %v100
    %v116 = vunpack.c.l.b16 %v101
    %v117 = vunpack.c.l.b16 %v102
    %v118 = vpack.c.b16 %v115, %v114
    %v119 = vpack.c.b16 %v117, %v116
    %v123 = vsel %vm53, %v98, 0
    %125 = vmatprep.subr.bf16.mxu0 0
    %126 = vmatpush1.bf16.msra.mxu0 %v118
    %127 = vmatprep.subr.bf16.mxu0 0
    %128 = vmatpush1.bf16.msra.mxu0 %v119
    %129 = vmatprep.subr.bf16.mxu0 0
    %130 = vmatpush1.bf16.msra.mxu0 0
    %131 = vmatprep.subr.bf16.mxu0 0
    %132 = vmatpush1.bf16.msra.mxu0 0
    %133 = vmatprep.subr.bf16.mxu0 0
    %134 = vmatpush1.bf16.msra.mxu0 0
    %135 = vmatprep.subr.bf16.mxu0 0
    %136 = vmatpush1.bf16.msra.mxu0 0
    %137 = vmatprep.subr.bf16.mxu0 0
    %138 = vmatpush1.bf16.msra.mxu0 0
    %139 = vmatprep.subr.bf16.mxu0 0
    %140 = vmatpush1.bf16.msra.mxu0 0
    %141 = vmatprep.subr.bf16.mxu0 0
    %142 = vmatpush1.bf16.msra.mxu0 0
    %143 = vmatprep.subr.bf16.mxu0 0
    %144 = vmatpush1.bf16.msra.mxu0 0
    %145 = vmatprep.subr.bf16.mxu0 0
    %146 = vmatpush1.bf16.msra.mxu0 0
    %147 = vmatprep.subr.bf16.mxu0 0
    %148 = vmatpush1.bf16.msra.mxu0 0
    %149 = vmatprep.subr.bf16.mxu0 0
    %150 = vmatpush1.bf16.msra.mxu0 0
    %151 = vmatprep.subr.bf16.mxu0 0
    %152 = vmatpush1.bf16.msra.mxu0 0
    %153 = vmatprep.subr.bf16.mxu0 0
    %154 = vmatpush1.bf16.msra.mxu0 0
    %155 = vmatprep.subr.bf16.mxu0 0
    %156 = vmatpush1.bf16.msra.mxu0 0
    %157 = vmatprep.mubr.bf16.mxu0 0
    %158 = vmatmul.mubr.bf16.gmra.mrb[0].mxu0 %v123
    %v159 = vpop.f32.mrb[0].mxu0
    %v160 = vadd.f32 %v108, %v159
    %v161 = vpop.f32.mrb[0].mxu0
    %v162 = vpop.f32.mrb[0].mxu0
    %v163 = vpop.f32.mrb[0].mxu0
    %164 = vdwg.mxu0
    %vm165 = vcmask 9216
    %166 = vst.msk [vmem:[#allocation2] sm:$0x3] %vm165, %v160
    %v167 = vsel %vm165, %v160, -inf
    %168 = vmax.xlane.f32.xlu0 %v167
    %v169 = vpop.xlane.xlu0 %168
    %v170 = vsub.f32 %v160, %v169
    %v171 = vmul.f32 %v170, 1.442695
    %v172 = vpow.pop %v171
    %v173 = vsel %vm165, %v172, 0.0
    %174 = vadd.xlane.f32.xlu0 %v173
    %v175 = vpop.xlane.xlu0 %174
    %v176 = vlog2.pop %v175
    %v177 = vmul.f32 %v176, 0.6931472
    %v178 = vadd.f32 %v169, %v177
    %v179 = vld [vmem:[%s5] sm:$0x3]
    %v180 = vsub.f32 %v178, %v160
    %v181 = vmul.f32 %v179, %v180
    %v182 = vsel %vm165, %v181, 0.0
    %183 = vadd.xlane.f32.xlu0 %v182
    %v184 = vpop.xlane.xlu0 %183
    %vm185 = vcmask 1041408
    %v186 = vsel %vm185, %v184, 0.0
    %v187 = vrot.slane %v186, 4
    %v188 = vadd.f32 %v186, %v187
    %v189 = vrot.slane %v188, 2
    %v190 = vadd.f32 %v188, %v189
    %v191 = vrot.slane %v190, 1
    %v192 = vadd.f32 %v190, %v191
    %v193 = vmul.f32 %v192, 0.5
    %vm194 = vcmask 0
    %195 = vst.msk [vmem:[#allocation4] sm:$0x1] %vm194, %v193
    // Predicated region
    $region26: #{bert_forward.7} parent=1 // pred_check
      _
    $region27: #{bert_forward.7} parent=1 // pred_check_branch
      %197 = sbr.rel (0) target = $region29
    $region28: #{bert_forward.7} parent=1 // pred_region
      %s199 = ssub.s32 32, 32
      %200 = vsyncadd [#allocation3], %s199
      %s202 = sshll.u32 [#allocation2], 4
      %s203 = int_to_ptr.vmem [resolvable:$true] %s202
      %205 = dma.vmem_to_hbm [thread:$0]  %s203, 32, %s6, [#allocation3]
    $region29: #{bert_forward.7} parent=1 // pred_fallthru
      _
    // Predicated region
    $region30: #{bert_forward.7} parent=1 // pred_check
      _
    $region31: #{bert_forward.7} parent=1 // pred_check_branch
      %207 = sbr.rel (0) target = $region33
    $region32: #{bert_forward.7} parent=1 // pred_region
      %s209 = ssub.s32 16, 16
      %210 = vsyncadd [#allocation5], %s209
      %s212 = sshll.u32 [#allocation4], 4
      %s213 = int_to_ptr.vmem [resolvable:$true] %s212
      %215 = dma.vmem_to_hbm [thread:$0]  %s213, 16, %s7, [#allocation5]
    $region33: #{bert_forward.7} parent=1 // pred_fallthru
      _
    // Predicated region
    $region34: #{bert_forward.7} parent=1 // pred_check
      _
    $region35: #{bert_forward.7} parent=1 // pred_check_branch
      %217 = sbr.rel (0) target = $region37
    $region36: #{bert_forward.7} parent=1 // pred_region
      %218 = dma.done [#allocation3], 32
    $region37: #{bert_forward.7} parent=1 // pred_fallthru
      _
    // Predicated region
    $region38: #{bert_forward.7} parent=1 // pred_check
      _
    $region39: #{bert_forward.7} parent=1 // pred_check_branch
      %220 = sbr.rel (0) target = $region41
    $region40: #{bert_forward.7} parent=1 // pred_region
      %221 = dma.done [#allocation5], 16
    $region41: #{bert_forward.7} parent=1 // pred_fallthru
      _
    %222 = vsyncpa [#allocation3], 1
    %223 = vsyncpa [#allocation5], 1

// kernel: bert_forward.5
$region0: #{bert_forward.5}
  #allocation0 [shape = 'u32[]', space=smem, size = 0x4, offset = 0x4, fixed_abs, tag = 'smem constant byte address 0x4 - core index']
  #allocation1 [shape = 'u32[144,128]{1,0:T(1,128)}', space=vmem, size = 0x12000, scoped, tag = 'internal scratch']
  #allocation2 [shape = 'f32[8,32]{1,0:T(8,128)}', space=vmem, size = 0x1000, scoped, tag = 'scratch operand']
  %s0 = inlined_call_operand.vmem [shape: f32[2,8,32], index: 0, kind: input, shape index: {}]
  %s1 = inlined_call_operand.vmem [shape: f32[2,1,8], index: 1, kind: input, shape index: {}]
  %s2 = inlined_call_operand.vmem [shape: bf16[32,96], index: 2, kind: input, shape index: {}]
  %s3 = inlined_call_operand.vmem [shape: f32[1,96], index: 3, kind: input, shape index: {}]
  %s4 = inlined_call_operand.vmem [shape: bf16[32,32], index: 4, kind: input, shape index: {}]
  %s5 = inlined_call_operand.vmem [shape: f32[1,32], index: 5, kind: input, shape index: {}]
  %s6 = inlined_call_operand.vmem [shape: f32[1,32], index: 6, kind: input, shape index: {}]
  %s7 = inlined_call_operand.vmem [shape: f32[1,32], index: 7, kind: input, shape index: {}]
  %s8 = inlined_call_operand.vmem [shape: bf16[32,64], index: 8, kind: input, shape index: {}]
  %s9 = inlined_call_operand.vmem [shape: f32[1,64], index: 9, kind: input, shape index: {}]
  %s10 = inlined_call_operand.vmem [shape: bf16[64,32], index: 10, kind: input, shape index: {}]
  %s11 = inlined_call_operand.vmem [shape: f32[1,32], index: 11, kind: input, shape index: {}]
  %s12 = inlined_call_operand.vmem [shape: f32[1,32], index: 12, kind: input, shape index: {}]
  %s13 = inlined_call_operand.vmem [shape: f32[1,32], index: 13, kind: input, shape index: {}]
  %s14 = inlined_call_operand.vmem [shape: f32[2,8,32], index: 14, kind: output, shape index: {}]
  %s15 = sld [smem:[#allocation0]]
  $region89: #{bert_forward.5} parent=0
    _
  %s17 = ssub.s32 1, %s15
  %s18 = scalar_select 0, %s17, %s15
  loop: start=0, step=1, limit=4
  $region2: #{bert_forward.5} parent=0 // loop_pre_header
    _
  $region3: #{bert_forward.5} parent=0 // loop_header
    %s20 = sphi 0, %s24
    %p21 = scmp.ge.s32.totalorder %s20, 4
    %s30 = sphi 0, %s32
    %s33 = sphi 0, %s30
    %s34 = sphi 0, %s33
    %s50 = sphi 0, %s34
    %s56 = sphi 0, %s58
    %s59 = sphi 0, %s56
    %s60 = sphi 0, %s59
    %s76 = sphi 0, %s60
    %s80 = sphi 0, %s80
    %s82 = sphi 0, %s80
    %s83 = sphi 0, %s82
    %s97 = sphi 0, %s83
    %s101 = sphi 0, %s101
    %s103 = sphi 0, %s101
    %s104 = sphi 0, %s103
    %s118 = sphi 0, %s104
    %s122 = sphi 0, %s122
    %s124 = sphi 0, %s122
    %s125 = sphi 0, %s124
    %s139 = sphi 0, %s125
    %s143 = sphi 0, %s143
    %s145 = sphi 0, %s143
    %s146 = sphi 0, %s145
    %s160 = sphi 0, %s146
    %s164 = sphi 0, %s164
    %s166 = sphi 0, %s164
    %s167 = sphi 0, %s166
    %s181 = sphi 0, %s167
    %s185 = sphi 0, %s185
    %s187 = sphi 0, %s185
    %s188 = sphi 0, %s187
    %s202 = sphi 0, %s188
    %s206 = sphi 0, %s206
    %s208 = sphi 0, %s206
    %s209 = sphi 0, %s208
    %s223 = sphi 0, %s209
    %s227 = sphi 0, %s227
    %s229 = sphi 0, %s227
    %s230 = sphi 0, %s229
    %s244 = sphi 0, %s230
    %s248 = sphi 0, %s248
    %s250 = sphi 0, %s248
    %s251 = sphi 0, %s250
    %s265 = sphi 0, %s251
    %s269 = sphi 0, %s269
    %s271 = sphi 0, %s269
    %s272 = sphi 0, %s271
    %s286 = sphi 0, %s272
    %s290 = sphi 0, %s290
    %s292 = sphi 0, %s290
    %s293 = sphi 0, %s292
    %s307 = sphi 0, %s293
    %s311 = sphi 0, %s311
    %s313 = sphi 0, %s311
    %s314 = sphi 0, %s313
    %s328 = sphi 0, %s314
    %s334 = sphi 0, %s336
    %s337 = sphi 0, %s334
    %s338 = sphi 0, %s337
    %s354 = sphi 0, %s338
  $region4: #{bert_forward.5} parent=0 // loop_header_branch
    %23 = sbr.rel (%p21) target = $region8
  $region5: #{bert_forward.5} parent=0 // loop_body
    %s25 = ssub.s32 %s20, 1
    %s26 = ssub.s32 %s20, 2
    %s27 = sadd.s32 %s20, 1
    %s28 = ssub.s32 %s20, %s27
    %p29 = scmp.eq.s32.totalorder %s28, 0
    %s31 = sadd.s32 %s30, 1
    %s32 = scalar_select %p29, %s30, %s31
    %p35 = pneg %p29
    %p36 = scmp.eq.s32.totalorder %s20, 1
    %p37 = por %p35, %p36
    %p38 = scmp.ne.s32.totalorder %s30, %s33
    %p39 = scmp.eq.s32.totalorder %s20, 0
    %p40 = por %p38, %p39
    %p41 = scmp.ne.s32.totalorder %s30, %s33
    %p42 = scmp.eq.s32.totalorder %s25, 1
    %p43 = por %p41, %p42
    %p44 = scmp.ne.s32.totalorder %s33, %s34
    %p45 = scmp.eq.s32.totalorder %s25, 0
    %p46 = por %p44, %p45
    %p47 = scmp.ne.s32.totalorder %s33, %s34
    %p48 = scmp.eq.s32.totalorder %s26, 1
    %p49 = por %p47, %p48
    %p51 = scmp.ne.s32.totalorder %s34, %s50
    %p52 = scmp.eq.s32.totalorder %s26, 0
    %p53 = por %p51, %p52
    %s54 = ssub.s32 %s20, %s27
    %p55 = scmp.eq.s32.totalorder %s54, 0
    %s57 = sadd.s32 %s56, 1
    %s58 = scalar_select %p55, %s56, %s57
    %p61 = pneg %p55
    %p62 = scmp.eq.s32.totalorder %s20, 1
    %p63 = por %p61, %p62
    %p64 = scmp.ne.s32.totalorder %s56, %s59
    %p65 = scmp.eq.s32.totalorder %s20, 0
    %p66 = por %p64, %p65
    %p67 = scmp.ne.s32.totalorder %s56, %s59
    %p68 = scmp.eq.s32.totalorder %s25, 1
    %p69 = por %p67, %p68
    %p70 = scmp.ne.s32.totalorder %s59, %s60
    %p71 = scmp.eq.s32.totalorder %s25, 0
    %p72 = por %p70, %p71
    %p73 = scmp.ne.s32.totalorder %s59, %s60
    %p74 = scmp.eq.s32.totalorder %s26, 1
    %p75 = por %p73, %p74
    %p77 = scmp.ne.s32.totalorder %s60, %s76
    %p78 = scmp.eq.s32.totalorder %s26, 0
    %p79 = por %p77, %p78
    %s81 = sadd.s32 %s80, 1
    %p84 = scmp.eq.s32.totalorder %s20, 1
    %p85 = scmp.ne.s32.totalorder %s80, %s82
    %p86 = scmp.eq.s32.totalorder %s20, 0
    %p87 = por %p85, %p86
    %p88 = scmp.ne.s32.totalorder %s80, %s82
    %p89 = scmp.eq.s32.totalorder %s25, 1
    %p90 = por %p88, %p89
    %p91 = scmp.ne.s32.totalorder %s82, %s83
    %p92 = scmp.eq.s32.totalorder %s25, 0
    %p93 = por %p91, %p92
    %p94 = scmp.ne.s32.totalorder %s82, %s83
    %p95 = scmp.eq.s32.totalorder %s26, 1
    %p96 = por %p94, %p95
    %p98 = scmp.ne.s32.totalorder %s83, %s97
    %p99 = scmp.eq.s32.totalorder %s26, 0
    %p100 = por %p98, %p99
    %s102 = sadd.s32 %s101, 1
    %p105 = scmp.eq.s32.totalorder %s20, 1
    %p106 = scmp.ne.s32.totalorder %s101, %s103
    %p107 = scmp.eq.s32.totalorder %s20, 0
    %p108 = por %p106, %p107
    %p109 = scmp.ne.s32.totalorder %s101, %s103
    %p110 = scmp.eq.s32.totalorder %s25, 1
    %p111 = por %p109, %p110
    %p112 = scmp.ne.s32.totalorder %s103, %s104
    %p113 = scmp.eq.s32.totalorder %s25, 0
    %p114 = por %p112, %p113
    %p115 = scmp.ne.s32.totalorder %s103, %s104
    %p116 = scmp.eq.s32.totalorder %s26, 1
    %p117 = por %p115, %p116
    %p119 = scmp.ne.s32.totalorder %s104, %s118
    %p120 = scmp.eq.s32.totalorder %s26, 0
    %p121 = por %p119, %p120
    %s123 = sadd.s32 %s122, 1
    %p126 = scmp.eq.s32.totalorder %s20, 1
    %p127 = scmp.ne.s32.totalorder %s122, %s124
    %p128 = scmp.eq.s32.totalorder %s20, 0
    %p129 = por %p127, %p128
    %p130 = scmp.ne.s32.totalorder %s122, %s124
    %p131 = scmp.eq.s32.totalorder %s25, 1
    %p132 = por %p130, %p131
    %p133 = scmp.ne.s32.totalorder %s124, %s125
    %p134 = scmp.eq.s32.totalorder %s25, 0
    %p135 = por %p133, %p134
    %p136 = scmp.ne.s32.totalorder %s124, %s125
    %p137 = scmp.eq.s32.totalorder %s26, 1
    %p138 = por %p136, %p137
    %p140 = scmp.ne.s32.totalorder %s125, %s139
    %p141 = scmp.eq.s32.totalorder %s26, 0
    %p142 = por %p140, %p141
    %s144 = sadd.s32 %s143, 1
    %p147 = scmp.eq.s32.totalorder %s20, 1
    %p148 = scmp.ne.s32.totalorder %s143, %s145
    %p149 = scmp.eq.s32.totalorder %s20, 0
    %p150 = por %p148, %p149
    %p151 = scmp.ne.s32.totalorder %s143, %s145
    %p152 = scmp.eq.s32.totalorder %s25, 1
    %p153 = por %p151, %p152
    %p154 = scmp.ne.s32.totalorder %s145, %s146
    %p155 = scmp.eq.s32.totalorder %s25, 0
    %p156 = por %p154, %p155
    %p157 = scmp.ne.s32.totalorder %s145, %s146
    %p158 = scmp.eq.s32.totalorder %s26, 1
    %p159 = por %p157, %p158
    %p161 = scmp.ne.s32.totalorder %s146, %s160
    %p162 = scmp.eq.s32.totalorder %s26, 0
    %p163 = por %p161, %p162
    %s165 = sadd.s32 %s164, 1
    %p168 = scmp.eq.s32.totalorder %s20, 1
    %p169 = scmp.ne.s32.totalorder %s164, %s166
    %p170 = scmp.eq.s32.totalorder %s20, 0
    %p171 = por %p169, %p170
    %p172 = scmp.ne.s32.totalorder %s164, %s166
    %p173 = scmp.eq.s32.totalorder %s25, 1
    %p174 = por %p172, %p173
    %p175 = scmp.ne.s32.totalorder %s166, %s167
    %p176 = scmp.eq.s32.totalorder %s25, 0
    %p177 = por %p175, %p176
    %p178 = scmp.ne.s32.totalorder %s166, %s167
    %p179 = scmp.eq.s32.totalorder %s26, 1
    %p180 = por %p178, %p179
    %p182 = scmp.ne.s32.totalorder %s167, %s181
    %p183 = scmp.eq.s32.totalorder %s26, 0
    %p184 = por %p182, %p183
    %s186 = sadd.s32 %s185, 1
    %p189 = scmp.eq.s32.totalorder %s20, 1
    %p190 = scmp.ne.s32.totalorder %s185, %s187
    %p191 = scmp.eq.s32.totalorder %s20, 0
    %p192 = por %p190, %p191
    %p193 = scmp.ne.s32.totalorder %s185, %s187
    %p194 = scmp.eq.s32.totalorder %s25, 1
    %p195 = por %p193, %p194
    %p196 = scmp.ne.s32.totalorder %s187, %s188
    %p197 = scmp.eq.s32.totalorder %s25, 0
    %p198 = por %p196, %p197
    %p199 = scmp.ne.s32.totalorder %s187, %s188
    %p200 = scmp.eq.s32.totalorder %s26, 1
    %p201 = por %p199, %p200
    %p203 = scmp.ne.s32.totalorder %s188, %s202
    %p204 = scmp.eq.s32.totalorder %s26, 0
    %p205 = por %p203, %p204
    %s207 = sadd.s32 %s206, 1
    %p210 = scmp.eq.s32.totalorder %s20, 1
    %p211 = scmp.ne.s32.totalorder %s206, %s208
    %p212 = scmp.eq.s32.totalorder %s20, 0
    %p213 = por %p211, %p212
    %p214 = scmp.ne.s32.totalorder %s206, %s208
    %p215 = scmp.eq.s32.totalorder %s25, 1
    %p216 = por %p214, %p215
    %p217 = scmp.ne.s32.totalorder %s208, %s209
    %p218 = scmp.eq.s32.totalorder %s25, 0
    %p219 = por %p217, %p218
    %p220 = scmp.ne.s32.totalorder %s208, %s209
    %p221 = scmp.eq.s32.totalorder %s26, 1
    %p222 = por %p220, %p221
    %p224 = scmp.ne.s32.totalorder %s209, %s223
    %p225 = scmp.eq.s32.totalorder %s26, 0
    %p226 = por %p224, %p225
    %s228 = sadd.s32 %s227, 1
    %p231 = scmp.eq.s32.totalorder %s20, 1
    %p232 = scmp.ne.s32.totalorder %s227, %s229
    %p233 = scmp.eq.s32.totalorder %s20, 0
    %p234 = por %p232, %p233
    %p235 = scmp.ne.s32.totalorder %s227, %s229
    %p236 = scmp.eq.s32.totalorder %s25, 1
    %p237 = por %p235, %p236
    %p238 = scmp.ne.s32.totalorder %s229, %s230
    %p239 = scmp.eq.s32.totalorder %s25, 0
    %p240 = por %p238, %p239
    %p241 = scmp.ne.s32.totalorder %s229, %s230
    %p242 = scmp.eq.s32.totalorder %s26, 1
    %p243 = por %p241, %p242
    %p245 = scmp.ne.s32.totalorder %s230, %s244
    %p246 = scmp.eq.s32.totalorder %s26, 0
    %p247 = por %p245, %p246
    %s249 = sadd.s32 %s248, 1
    %p252 = scmp.eq.s32.totalorder %s20, 1
    %p253 = scmp.ne.s32.totalorder %s248, %s250
    %p254 = scmp.eq.s32.totalorder %s20, 0
    %p255 = por %p253, %p254
    %p256 = scmp.ne.s32.totalorder %s248, %s250
    %p257 = scmp.eq.s32.totalorder %s25, 1
    %p258 = por %p256, %p257
    %p259 = scmp.ne.s32.totalorder %s250, %s251
    %p260 = scmp.eq.s32.totalorder %s25, 0
    %p261 = por %p259, %p260
    %p262 = scmp.ne.s32.totalorder %s250, %s251
    %p263 = scmp.eq.s32.totalorder %s26, 1
    %p264 = por %p262, %p263
    %p266 = scmp.ne.s32.totalorder %s251, %s265
    %p267 = scmp.eq.s32.totalorder %s26, 0
    %p268 = por %p266, %p267
    %s270 = sadd.s32 %s269, 1
    %p273 = scmp.eq.s32.totalorder %s20, 1
    %p274 = scmp.ne.s32.totalorder %s269, %s271
    %p275 = scmp.eq.s32.totalorder %s20, 0
    %p276 = por %p274, %p275
    %p277 = scmp.ne.s32.totalorder %s269, %s271
    %p278 = scmp.eq.s32.totalorder %s25, 1
    %p279 = por %p277, %p278
    %p280 = scmp.ne.s32.totalorder %s271, %s272
    %p281 = scmp.eq.s32.totalorder %s25, 0
    %p282 = por %p280, %p281
    %p283 = scmp.ne.s32.totalorder %s271, %s272
    %p284 = scmp.eq.s32.totalorder %s26, 1
    %p285 = por %p283, %p284
    %p287 = scmp.ne.s32.totalorder %s272, %s286
    %p288 = scmp.eq.s32.totalorder %s26, 0
    %p289 = por %p287, %p288
    %s291 = sadd.s32 %s290, 1
    %p294 = scmp.eq.s32.totalorder %s20, 1
    %p295 = scmp.ne.s32.totalorder %s290, %s292
    %p296 = scmp.eq.s32.totalorder %s20, 0
    %p297 = por %p295, %p296
    %p298 = scmp.ne.s32.totalorder %s290, %s292
    %p299 = scmp.eq.s32.totalorder %s25, 1
    %p300 = por %p298, %p299
    %p301 = scmp.ne.s32.totalorder %s292, %s293
    %p302 = scmp.eq.s32.totalorder %s25, 0
    %p303 = por %p301, %p302
    %p304 = scmp.ne.s32.totalorder %s292, %s293
    %p305 = scmp.eq.s32.totalorder %s26, 1
    %p306 = por %p304, %p305
    %p308 = scmp.ne.s32.totalorder %s293, %s307
    %p309 = scmp.eq.s32.totalorder %s26, 0
    %p310 = por %p308, %p309
    %s312 = sadd.s32 %s311, 1
    %p315 = scmp.eq.s32.totalorder %s20, 1
    %p316 = scmp.ne.s32.totalorder %s311, %s313
    %p317 = scmp.eq.s32.totalorder %s20, 0
    %p318 = por %p316, %p317
    %p319 = scmp.ne.s32.totalorder %s311, %s313
    %p320 = scmp.eq.s32.totalorder %s25, 1
    %p321 = por %p319, %p320
    %p322 = scmp.ne.s32.totalorder %s313, %s314
    %p323 = scmp.eq.s32.totalorder %s25, 0
    %p324 = por %p322, %p323
    %p325 = scmp.ne.s32.totalorder %s313, %s314
    %p326 = scmp.eq.s32.totalorder %s26, 1
    %p327 = por %p325, %p326
    %p329 = scmp.ne.s32.totalorder %s314, %s328
    %p330 = scmp.eq.s32.totalorder %s26, 0
    %p331 = por %p329, %p330
    %s332 = ssub.s32 %s20, %s27
    %p333 = scmp.eq.s32.totalorder %s332, 0
    %s335 = sadd.s32 %s334, 1
    %s336 = scalar_select %p333, %s334, %s335
    %p339 = pneg %p333
    %p340 = scmp.eq.s32.totalorder %s20, 1
    %p341 = por %p339, %p340
    %p342 = scmp.ne.s32.totalorder %s334, %s337
    %p343 = scmp.eq.s32.totalorder %s20, 0
    %p344 = por %p342, %p343
    %p345 = scmp.ne.s32.totalorder %s334, %s337
    %p346 = scmp.eq.s32.totalorder %s25, 1
    %p347 = por %p345, %p346
    %p348 = scmp.ne.s32.totalorder %s337, %s338
    %p349 = scmp.eq.s32.totalorder %s25, 0
    %p350 = por %p348, %p349
    %p351 = scmp.ne.s32.totalorder %s337, %s338
    %p352 = scmp.eq.s32.totalorder %s26, 1
    %p353 = por %p351, %p352
    %p355 = scmp.ne.s32.totalorder %s338, %s354
    %p356 = scmp.eq.s32.totalorder %s26, 0
    %p357 = por %p355, %p356
    %p358 = scmp.le.s32.totalorder 1, %s20
    %p359 = scmp.lt.s32.totalorder %s20, 3
    %p360 = pnand %p358, %p359
    %p361 = pneg %p360
    // Predicated region
    $region9: #{bert_forward.5} parent=5 // pred_check
      _
    $region10: #{bert_forward.5} parent=5 // pred_check_branch
      %363 = sbr.rel (%p360) target = $region12
    $region11: #{bert_forward.5} parent=5 // pred_region
      %s364 = ssub.s32 %s20, 1
      // Predicated region
      $region13: #{bert_forward.5} parent=11 // pred_check
        %p365 = pneg %p93
      $region14: #{bert_forward.5} parent=11 // pred_check_branch
        %367 = sbr.rel (%p365) target = $region16
      $region15: #{bert_forward.5} parent=11 // pred_region
        _
      $region16: #{bert_forward.5} parent=11 // pred_fallthru
        _
      // Predicated region
      $region17: #{bert_forward.5} parent=11 // pred_check
        %p368 = pneg %p114
      $region18: #{bert_forward.5} parent=11 // pred_check_branch
        %370 = sbr.rel (%p368) target = $region20
      $region19: #{bert_forward.5} parent=11 // pred_region
        _
      $region20: #{bert_forward.5} parent=11 // pred_fallthru
        _
      // Predicated region
      $region21: #{bert_forward.5} parent=11 // pred_check
        %p371 = pneg %p135
      $region22: #{bert_forward.5} parent=11 // pred_check_branch
        %373 = sbr.rel (%p371) target = $region24
      $region23: #{bert_forward.5} parent=11 // pred_region
        _
      $region24: #{bert_forward.5} parent=11 // pred_fallthru
        _
      // Predicated region
      $region25: #{bert_forward.5} parent=11 // pred_check
        %p374 = pneg %p156
      $region26: #{bert_forward.5} parent=11 // pred_check_branch
        %376 = sbr.rel (%p374) target = $region28
      $region27: #{bert_forward.5} parent=11 // pred_region
        _
      $region28: #{bert_forward.5} parent=11 // pred_fallthru
        _
      // Predicated region
      $region29: #{bert_forward.5} parent=11 // pred_check
        %p377 = pneg %p177
      $region30: #{bert_forward.5} parent=11 // pred_check_branch
        %379 = sbr.rel (%p377) target = $region32
      $region31: #{bert_forward.5} parent=11 // pred_region
        _
      $region32: #{bert_forward.5} parent=11 // pred_fallthru
        _
      // Predicated region
      $region33: #{bert_forward.5} parent=11 // pred_check
        %p380 = pneg %p198
      $region34: #{bert_forward.5} parent=11 // pred_check_branch
        %382 = sbr.rel (%p380) target = $region36
      $region35: #{bert_forward.5} parent=11 // pred_region
        _
      $region36: #{bert_forward.5} parent=11 // pred_fallthru
        _
      // Predicated region
      $region37: #{bert_forward.5} parent=11 // pred_check
        %p383 = pneg %p219
      $region38: #{bert_forward.5} parent=11 // pred_check_branch
        %385 = sbr.rel (%p383) target = $region40
      $region39: #{bert_forward.5} parent=11 // pred_region
        _
      $region40: #{bert_forward.5} parent=11 // pred_fallthru
        _
      // Predicated region
      $region41: #{bert_forward.5} parent=11 // pred_check
        %p386 = pneg %p240
      $region42: #{bert_forward.5} parent=11 // pred_check_branch
        %388 = sbr.rel (%p386) target = $region44
      $region43: #{bert_forward.5} parent=11 // pred_region
        _
      $region44: #{bert_forward.5} parent=11 // pred_fallthru
        _
      // Predicated region
      $region45: #{bert_forward.5} parent=11 // pred_check
        %p389 = pneg %p261
      $region46: #{bert_forward.5} parent=11 // pred_check_branch
        %391 = sbr.rel (%p389) target = $region48
      $region47: #{bert_forward.5} parent=11 // pred_region
        _
      $region48: #{bert_forward.5} parent=11 // pred_fallthru
        _
      // Predicated region
      $region49: #{bert_forward.5} parent=11 // pred_check
        %p392 = pneg %p282
      $region50: #{bert_forward.5} parent=11 // pred_check_branch
        %394 = sbr.rel (%p392) target = $region52
      $region51: #{bert_forward.5} parent=11 // pred_region
        _
      $region52: #{bert_forward.5} parent=11 // pred_fallthru
        _
      // Predicated region
      $region53: #{bert_forward.5} parent=11 // pred_check
        %p395 = pneg %p303
      $region54: #{bert_forward.5} parent=11 // pred_check_branch
        %397 = sbr.rel (%p395) target = $region56
      $region55: #{bert_forward.5} parent=11 // pred_region
        _
      $region56: #{bert_forward.5} parent=11 // pred_fallthru
        _
      // Predicated region
      $region57: #{bert_forward.5} parent=11 // pred_check
        %p398 = pneg %p324
      $region58: #{bert_forward.5} parent=11 // pred_check_branch
        %400 = sbr.rel (%p398) target = $region60
      $region59: #{bert_forward.5} parent=11 // pred_region
        _
      $region60: #{bert_forward.5} parent=11 // pred_fallthru
        _
    $region12: #{bert_forward.5} parent=5 // pred_fallthru
      _
    %p401 = scmp.lt.s32.totalorder %s20, 2
    // Predicated region
    $region61: #{bert_forward.5} parent=5 // pred_check
      %p402 = pneg %p401
    $region62: #{bert_forward.5} parent=5 // pred_check_branch
      %404 = sbr.rel (%p402) target = $region64
    $region63: #{bert_forward.5} parent=5 // pred_region
      // Predicated region
      $region65: #{bert_forward.5} parent=63 // pred_check
        %p405 = pneg %p40
      $region66: #{bert_forward.5} parent=63 // pred_check_branch
        %407 = sbr.rel (%p405) target = $region68
      $region67: #{bert_forward.5} parent=63 // pred_region
        %p408 = scmp.lt.s32.totalorder %s20, 1
        %s409 = scalar_select %p408, %s20, 1
        %s410 = smul.addr %s409, 8
        %s411 = scalar_lea.vmem %s0, %s410
      $region68: #{bert_forward.5} parent=63 // pred_fallthru
        _
      // Predicated region
      $region69: #{bert_forward.5} parent=63 // pred_check
        %p412 = pneg %p66
      $region70: #{bert_forward.5} parent=63 // pred_check_branch
        %414 = sbr.rel (%p412) target = $region72
      $region71: #{bert_forward.5} parent=63 // pred_region
        %p415 = scmp.lt.s32.totalorder %s20, 1
        %s416 = scalar_select %p415, %s20, 1
        %s417 = scalar_lea.vmem %s1, %s416
      $region72: #{bert_forward.5} parent=63 // pred_fallthru
        _
    $region64: #{bert_forward.5} parent=5 // pred_fallthru
      _
    %p418 = scmp.le.s32.totalorder 1, %s20
    %p419 = scmp.lt.s32.totalorder %s20, 3
    %p420 = pnand %p418, %p419
    %p421 = pneg %p420
    // Predicated region
    $region73: #{bert_forward.5} parent=5 // pred_check
      _
    $region74: #{bert_forward.5} parent=5 // pred_check_branch
      %423 = sbr.rel (%p420) target = $region76
    $region75: #{bert_forward.5} parent=5 // pred_region
      %s424 = ssub.s32 %s20, 1
      %p425 = scmp.lt.s32.totalorder %s25, 1
      %s426 = scalar_select %p425, %s25, 1
      %s427 = smul.addr %s426, 8
      %s428 = scalar_lea.vmem %s0, %s427
      %p429 = pneg %p46
      %p430 = pneg %p43
      %p431 = scmp.lt.s32.totalorder %s25, 1
      %s432 = scalar_select %p431, %s25, 1
      %s433 = scalar_lea.vmem %s1, %s432
      %p434 = pneg %p72
      %p435 = pneg %p69
      %p436 = pneg %p93
      %p437 = pneg %p90
      %p438 = pneg %p114
      %p439 = pneg %p111
      %p440 = pneg %p135
      %p441 = pneg %p132
      %p442 = pneg %p156
      %p443 = pneg %p153
      %p444 = pneg %p177
      %p445 = pneg %p174
      %p446 = pneg %p198
      %p447 = pneg %p195
      %p448 = pneg %p219
      %p449 = pneg %p216
      %p450 = pneg %p240
      %p451 = pneg %p237
      %p452 = pneg %p261
      %p453 = pneg %p258
      %p454 = pneg %p282
      %p455 = pneg %p279
      %p456 = pneg %p303
      %p457 = pneg %p300
      %p458 = pneg %p324
      %p459 = pneg %p321
      %p460 = pneg %p350
      %p461 = pneg %p347
      %p462 = scmp.lt.s32.totalorder %s25, 1
      %s463 = scalar_select %p462, %s25, 1
      %s464 = smul.addr %s463, 8
      %s465 = scalar_lea.vmem %s14, %s464
      %p466 = scmp.lt.s32.totalorder %s25, 1
      %s467 = scalar_select %p466, %s25, 1
      %s468 = smul.addr %s467, 8
      %s469 = scalar_lea.vmem %s0, %s468
      %p470 = scmp.lt.s32.totalorder %s25, 1
      %s471 = scalar_select %p470, %s25, 1
      %s472 = scalar_lea.vmem %s1, %s471
      %p473 = scmp.lt.s32.totalorder %s25, 1
      %s474 = scalar_select %p473, %s25, 1
      %s475 = smul.addr %s474, 8
      %s476 = scalar_lea.vmem %s14, %s475
      %v478 = vld [vmem:[%s469] sm:$0xff]
      %v479 = vpack.c.bf16 %v478, %v478
      %v480 = vld [vmem:[%s2] sm:$0xf]
      %v481 = vld [vmem:[%s2 + $0x4] sm:$0xf]
      %v482 = vld [vmem:[%s2 + $0x8] sm:$0xf]
      %v483 = vld [vmem:[%s2 + $0xc] sm:$0xf]
      %v484 = vld [vmem:[%s3] sm:$0x1]
      %v486 = vlaneseq
      %v487 = vshrl.u32 %v486, 7
      %v488 = vsub.s32 0, %v487
      %v489 = vrot.slane %v484, %v488
      %v495 = vunpack.c.l.b16 %v480
      %v496 = vunpack.c.l.b16 %v481
      %v497 = vunpack.c.l.b16 %v482
      %v498 = vunpack.c.l.b16 %v483
      %v499 = vpack.c.b16 %v496, %v495
      %v500 = vpack.c.b16 %v498, %v497
      %vm503 = vcmask 261120
      %v505 = vsel %vm503, %v479, 0
      %507 = vmatprep.subr.bf16.mxu0 0
      %508 = vmatpush1.bf16.msra.mxu0 %v499
      %509 = vmatprep.subr.bf16.mxu0 0
      %510 = vmatpush1.bf16.msra.mxu0 %v500
      %511 = vmatprep.subr.bf16.mxu0 0
      %512 = vmatpush1.bf16.msra.mxu0 0
      %513 = vmatprep.subr.bf16.mxu0 0
      %514 = vmatpush1.bf16.msra.mxu0 0
      %515 = vmatprep.subr.bf16.mxu0 0
      %516 = vmatpush1.bf16.msra.mxu0 0
      %517 = vmatprep.subr.bf16.mxu0 0
      %518 = vmatpush1.bf16.msra.mxu0 0
      %519 = vmatprep.subr.bf16.mxu0 0
      %520 = vmatpush1.bf16.msra.mxu0 0
      %521 = vmatprep.subr.bf16.mxu0 0
      %522 = vmatpush1.bf16.msra.mxu0 0
      %523 = vmatprep.subr.bf16.mxu0 0
      %524 = vmatpush1.bf16.msra.mxu0 0
      %525 = vmatprep.subr.bf16.mxu0 0
      %526 = vmatpush1.bf16.msra.mxu0 0
      %527 = vmatprep.subr.bf16.mxu0 0
      %528 = vmatpush1.bf16.msra.mxu0 0
      %529 = vmatprep.subr.bf16.mxu0 0
      %530 = vmatpush1.bf16.msra.mxu0 0
      %531 = vmatprep.subr.bf16.mxu0 0
      %532 = vmatpush1.bf16.msra.mxu0 0
      %533 = vmatprep.subr.bf16.mxu0 0
      %534 = vmatpush1.bf16.msra.mxu0 0
      %535 = vmatprep.subr.bf16.mxu0 0
      %536 = vmatpush1.bf16.msra.mxu0 0
      %537 = vmatprep.subr.bf16.mxu0 0
      %538 = vmatpush1.bf16.msra.mxu0 0
      %539 = vmatprep.mubr.bf16.mxu0 0
      %540 = vmatmul.mubr.bf16.gmra.mrb[0].mxu0 %v505
      %v541 = vpop.f32.mrb[0].mxu0
      %v542 = vadd.f32 %v489, %v541
      %v543 = vpop.f32.mrb[0].mxu0
      %v544 = vpop.f32.mrb[0].mxu0
      %v545 = vpop.f32.mrb[0].mxu0
      %546 = vdwg.mxu0
      %v547 = vld [vmem:[%s472] sm:$0x1]
      %v548 = vsub.f32 1.0, %v547
      %v549 = vmul.f32 %v548, -10000.0
      %v550 = vpack.c.bf16 %v542, %v542
      %552 = vrot.lane.b32.xlu0 %v550, 96
      %v553 = vpop.permute.xlu0 %552
      %vm554 = vcmask 64512
      %v556 = vsel %vm554, %v550, 0
      %v559 = vsel %vm554, %v553, 0
      %561 = vmatprep.subr.bf16.mxu0 0
      %562 = vmatpush1.bf16.xpose.msra.mxu0 %v559
      %563 = vmatprep.subr.bf16.mxu0 0
      %564 = vmatpush1.bf16.xpose.msra.mxu0 0
      %565 = vmatprep.subr.bf16.mxu0 0
      %566 = vmatpush1.bf16.xpose.msra.mxu0 0
      %567 = vmatprep.subr.bf16.mxu0 0
      %568 = vmatpush1.bf16.xpose.msra.mxu0 0
      %569 = vmatprep.subr.bf16.mxu0 0
      %570 = vmatpush1.bf16.xpose.msra.mxu0 0
      %571 = vmatprep.subr.bf16.mxu0 0
      %572 = vmatpush1.bf16.xpose.msra.mxu0 0
      %573 = vmatprep.subr.bf16.mxu0 0
      %574 = vmatpush1.bf16.xpose.msra.mxu0 0
      %575 = vmatprep.subr.bf16.mxu0 0
      %576 = vmatpush1.bf16.xpose.msra.mxu0 0
      %577 = vmatprep.subr.bf16.mxu0 0
      %578 = vmatpush1.bf16.xpose.msra.mxu0 0
      %579 = vmatprep.subr.bf16.mxu0 0
      %580 = vmatpush1.bf16.xpose.msra.mxu0 0
      %581 = vmatprep.subr.bf16.mxu0 0
      %582 = vmatpush1.bf16.xpose.msra.mxu0 0
      %583 = vmatprep.subr.bf16.mxu0 0
      %584 = vmatpush1.bf16.xpose.msra.mxu0 0
      %585 = vmatprep.subr.bf16.mxu0 0
      %586 = vmatpush1.bf16.xpose.msra.mxu0 0
      %587 = vmatprep.subr.bf16.mxu0 0
      %588 = vmatpush1.bf16.xpose.msra.mxu0 0
      %589 = vmatprep.subr.bf16.mxu0 0
      %590 = vmatpush1.bf16.xpose.msra.mxu0 0
      %591 = vmatprep.subr.bf16.mxu0 0
      %592 = vmatpush1.bf16.xpose.msra.mxu0 0
      %593 = vmatprep.mubr.bf16.mxu0 0
      %594 = vmatmul.mubr.bf16.gmra.mrb[0].mxu0 %v556
      %v595 = vpop.f32.mrb[0].mxu0
      %v596 = vadd.f32 0.0, %v595
      %v597 = vpop.f32.mrb[0].mxu0
      %v598 = vpop.f32.mrb[0].mxu0
      %v599 = vpop.f32.mrb[0].mxu0
      %600 = vdwg.mxu0
      %v601 = vmul.f32 %v596, 0.35355338
      %v603 = vlaneseq
      %v604 = vshrl.u32 %v603, 7
      %v605 = vsub.s32 0, %v604
      %v606 = vrot.slane %v549, %v605
      %v608 = vadd.f32 %v601, %v606
      %v609 = vsel %vm554, %v608, -inf
      %610 = vmax.xlane.f32.xlu0 %v609
      %v611 = vpop.xlane.xlu0 %610
      %v612 = vsub.f32 %v608, %v611
      %v613 = vmul.f32 %v612, 1.442695
      %v614 = vpow.pop %v613
      %v615 = vsel %vm554, %v614, 0.0
      %616 = vadd.xlane.f32.xlu0 %v615
      %v617 = vpop.xlane.xlu0 %616
      %v618 = vrcp.pop %v617
      %v619 = vmul.f32 %v614, %v618
      %v620 = vpack.c.bf16 %v619, %v619
      %621 = vrot.lane.b32.xlu0 %v550, 64
      %v622 = vpop.permute.xlu0 %621
      %v624 = vsel %vm554, %v620, 0
      %vm626 = vcmask 1043456
      %v628 = vsel %vm626, %v622, 0
      %630 = vmatprep.subr.bf16.mxu0 0
      %631 = vmatpush1.bf16.msra.mxu0 %v628
      %632 = vmatprep.subr.bf16.mxu0 0
      %633 = vmatpush1.bf16.msra.mxu0 0
      %634 = vmatprep.subr.bf16.mxu0 0
      %635 = vmatpush1.bf16.msra.mxu0 0
      %636 = vmatprep.subr.bf16.mxu0 0
      %637 = vmatpush1.bf16.msra.mxu0 0
      %638 = vmatprep.subr.bf16.mxu0 0
      %639 = vmatpush1.bf16.msra.mxu0 0
      %640 = vmatprep.subr.bf16.mxu0 0
      %641 = vmatpush1.bf16.msra.mxu0 0
      %642 = vmatprep.subr.bf16.mxu0 0
      %643 = vmatpush1.bf16.msra.mxu0 0
      %644 = vmatprep.subr.bf16.mxu0 0
      %645 = vmatpush1.bf16.msra.mxu0 0
      %646 = vmatprep.subr.bf16.mxu0 0
      %647 = vmatpush1.bf16.msra.mxu0 0
      %648 = vmatprep.subr.bf16.mxu0 0
      %649 = vmatpush1.bf16.msra.mxu0 0
      %650 = vmatprep.subr.bf16.mxu0 0
      %651 = vmatpush1.bf16.msra.mxu0 0
      %652 = vmatprep.subr.bf16.mxu0 0
      %653 = vmatpush1.bf16.msra.mxu0 0
      %654 = vmatprep.subr.bf16.mxu0 0
      %655 = vmatpush1.bf16.msra.mxu0 0
      %656 = vmatprep.subr.bf16.mxu0 0
      %657 = vmatpush1.bf16.msra.mxu0 0
      %658 = vmatprep.subr.bf16.mxu0 0
      %659 = vmatpush1.bf16.msra.mxu0 0
      %660 = vmatprep.subr.bf16.mxu0 0
      %661 = vmatpush1.bf16.msra.mxu0 0
      %662 = vmatprep.mubr.bf16.mxu0 0
      %663 = vmatmul.mubr.bf16.gmra.mrb[0].mxu0 %v624
      %v664 = vpop.f32.mrb[0].mxu0
      %v665 = vadd.f32 0.0, %v664
      %v666 = vpop.f32.mrb[0].mxu0
      %v667 = vpop.f32.mrb[0].mxu0
      %v668 = vpop.f32.mrb[0].mxu0
      %669 = vdwg.mxu0
      %670 = vst.msk [vmem:[#allocation2] sm:$0xff] %vm554, %v665
      %671 = vrot.lane.b32.xlu0 %v550, 120
      %v672 = vpop.permute.xlu0 %671
      %673 = vrot.lane.b32.xlu0 %v550, 88
      %v674 = vpop.permute.xlu0 %673
      %v676 = vsel %vm554, %v672, 0
      %v679 = vsel %vm554, %v674, 0
      %681 = vmatprep.subr.bf16.mxu0 0
      %682 = vmatpush1.bf16.xpose.msra.mxu0 %v679
      %683 = vmatprep.subr.bf16.mxu0 0
      %684 = vmatpush1.bf16.xpose.msra.mxu0 0
      %685 = vmatprep.subr.bf16.mxu0 0
      %686 = vmatpush1.bf16.xpose.msra.mxu0 0
      %687 = vmatprep.subr.bf16.mxu0 0
      %688 = vmatpush1.bf16.xpose.msra.mxu0 0
      %689 = vmatprep.subr.bf16.mxu0 0
      %690 = vmatpush1.bf16.xpose.msra.mxu0 0
      %691 = vmatprep.subr.bf16.mxu0 0
      %692 = vmatpush1.bf16.xpose.msra.mxu0 0
      %693 = vmatprep.subr.bf16.mxu0 0
      %694 = vmatpush1.bf16.xpose.msra.mxu0 0
      %695 = vmatprep.subr.bf16.mxu0 0
      %696 = vmatpush1.bf16.xpose.msra.mxu0 0
      %697 = vmatprep.subr.bf16.mxu0 0
      %698 = vmatpush1.bf16.xpose.msra.mxu0 0
      %699 = vmatprep.subr.bf16.mxu0 0
      %700 = vmatpush1.bf16.xpose.msra.mxu0 0
      %701 = vmatprep.subr.bf16.mxu0 0
      %702 = vmatpush1.bf16.xpose.msra.mxu0 0
      %703 = vmatprep.subr.bf16.mxu0 0
      %704 = vmatpush1.bf16.xpose.msra.mxu0 0
      %705 = vmatprep.subr.bf16.mxu0 0
      %706 = vmatpush1.bf16.xpose.msra.mxu0 0
      %707 = vmatprep.subr.bf16.mxu0 0
      %708 = vmatpush1.bf16.xpose.msra.mxu0 0
      %709 = vmatprep.subr.bf16.mxu0 0
      %710 = vmatpush1.bf16.xpose.msra.mxu0 0
      %711 = vmatprep.subr.bf16.mxu0 0
      %712 = vmatpush1.bf16.xpose.msra.mxu0 0
      %713 = vmatprep.mubr.bf16.mxu0 0
      %714 = vmatmul.mubr.bf16.gmra.mrb[0].mxu0 %v676
      %v715 = vpop.f32.mrb[0].mxu0
      %v716 = vadd.f32 0.0, %v715
      %v717 = vpop.f32.mrb[0].mxu0
      %v718 = vpop.f32.mrb[0].mxu0
      %v719 = vpop.f32.mrb[0].mxu0
      %720 = vdwg.mxu0
      %v721 = vmul.f32 %v716, 0.35355338
      %v722 = vadd.f32 %v721, %v606
      %v723 = vsel %vm554, %v722, -inf
      %724 = vmax.xlane.f32.xlu0 %v723
      %v725 = vpop.xlane.xlu0 %724
      %v726 = vsub.f32 %v722, %v725
      %v727 = vmul.f32 %v726, 1.442695
      %v728 = vpow.pop %v727
      %v729 = vsel %vm554, %v728, 0.0
      %730 = vadd.xlane.f32.xlu0 %v729
      %v731 = vpop.xlane.xlu0 %730
      %v732 = vrcp.pop %v731
      %v733 = vmul.f32 %v728, %v732
      %v734 = vpack.c.bf16 %v733, %v733
      %735 = vrot.lane.b32.xlu0 %v550, 56
      %v736 = vpop.permute.xlu0 %735
      %v738 = vsel %vm554, %v734, 0
      %v741 = vsel %vm626, %v736, 0
      %743 = vmatprep.subr.bf16.mxu0 0
      %744 = vmatpush1.bf16.msra.mxu0 %v741
      %745 = vmatprep.subr.bf16.mxu0 0
      %746 = vmatpush1.bf16.msra.mxu0 0
      %747 = vmatprep.subr.bf16.mxu0 0
      %748 = vmatpush1.bf16.msra.mxu0 0
      %749 = vmatprep.subr.bf16.mxu0 0
      %750 = vmatpush1.bf16.msra.mxu0 0
      %751 = vmatprep.subr.bf16.mxu0 0
      %752 = vmatpush1.bf16.msra.mxu0 0
      %753 = vmatprep.subr.bf16.mxu0 0
      %754 = vmatpush1.bf16.msra.mxu0 0
      %755 = vmatprep.subr.bf16.mxu0 0
      %756 = vmatpush1.bf16.msra.mxu0 0
      %757 = vmatprep.subr.bf16.mxu0 0
      %758 = vmatpush1.bf16.msra.mxu0 0
      %759 = vmatprep.subr.bf16.mxu0 0
      %760 = vmatpush1.bf16.msra.mxu0 0
      %761 = vmatprep.subr.bf16.mxu0 0
      %762 = vmatpush1.bf16.msra.mxu0 0
      %763 = vmatprep.subr.bf16.mxu0 0
      %764 = vmatpush1.bf16.msra.mxu0 0
      %765 = vmatprep.subr.bf16.mxu0 0
      %766 = vmatpush1.bf16.msra.mxu0 0
      %767 = vmatprep.subr.bf16.mxu0 0
      %768 = vmatpush1.bf16.msra.mxu0 0
      %769 = vmatprep.subr.bf16.mxu0 0
      %770 = vmatpush1.bf16.msra.mxu0 0
      %771 = vmatprep.subr.bf16.mxu0 0
      %772 = vmatpush1.bf16.msra.mxu0 0
      %773 = vmatprep.subr.bf16.mxu0 0
      %774 = vmatpush1.bf16.msra.mxu0 0
      %775 = vmatprep.mubr.bf16.mxu0 0
      %776 = vmatmul.mubr.bf16.gmra.mrb[0].mxu0 %v738
      %v777 = vpop.f32.mrb[0].mxu0
      %v778 = vadd.f32 0.0, %v777
      %v779 = vpop.f32.mrb[0].mxu0
      %v780 = vpop.f32.mrb[0].mxu0
      %v781 = vpop.f32.mrb[0].mxu0
      %782 = vdwg.mxu0
      %784 = vrot.lane.b32.xlu0 %v778, 8
      %v785 = vpop.permute.xlu0 %784
      %vm787 = vcmask 130112
      %788 = vst.msk [vmem:[#allocation2] sm:$0xff] %vm787, %v785
      %789 = vrot.lane.b32.xlu0 %v550, 112
      %v790 = vpop.permute.xlu0 %789
      %791 = vrot.lane.b32.xlu0 %v550, 80
      %v792 = vpop.permute.xlu0 %791
      %v794 = vsel %vm554, %v790, 0
      %v797 = vsel %vm554, %v792, 0
      %799 = vmatprep.subr.bf16.mxu0 0
      %800 = vmatpush1.bf16.xpose.msra.mxu0 %v797
      %801 = vmatprep.subr.bf16.mxu0 0
      %802 = vmatpush1.bf16.xpose.msra.mxu0 0
      %803 = vmatprep.subr.bf16.mxu0 0
      %804 = vmatpush1.bf16.xpose.msra.mxu0 0
      %805 = vmatprep.subr.bf16.mxu0 0
      %806 = vmatpush1.bf16.xpose.msra.mxu0 0
      %807 = vmatprep.subr.bf16.mxu0 0
      %808 = vmatpush1.bf16.xpose.msra.mxu0 0
      %809 = vmatprep.subr.bf16.mxu0 0
      %810 = vmatpush1.bf16.xpose.msra.mxu0 0
      %811 = vmatprep.subr.bf16.mxu0 0
      %812 = vmatpush1.bf16.xpose.msra.mxu0 0
      %813 = vmatprep.subr.bf16.mxu0 0
      %814 = vmatpush1.bf16.xpose.msra.mxu0 0
      %815 = vmatprep.subr.bf16.mxu0 0
      %816 = vmatpush1.bf16.xpose.msra.mxu0 0
      %817 = vmatprep.subr.bf16.mxu0 0
      %818 = vmatpush1.bf16.xpose.msra.mxu0 0
      %819 = vmatprep.subr.bf16.mxu0 0
      %820 = vmatpush1.bf16.xpose.msra.mxu0 0
      %821 = vmatprep.subr.bf16.mxu0 0
      %822 = vmatpush1.bf16.xpose.msra.mxu0 0
      %823 = vmatprep.subr.bf16.mxu0 0
      %824 = vmatpush1.bf16.xpose.msra.mxu0 0
      %825 = vmatprep.subr.bf16.mxu0 0
      %826 = vmatpush1.bf16.xpose.msra.mxu0 0
      %827 = vmatprep.subr.bf16.mxu0 0
      %828 = vmatpush1.bf16.xpose.msra.mxu0 0
      %829 = vmatprep.subr.bf16.mxu0 0
      %830 = vmatpush1.bf16.xpose.msra.mxu0 0
      %831 = vmatprep.mubr.bf16.mxu0 0
      %832 = vmatmul.mubr.bf16.gmra.mrb[0].mxu0 %v794
      %v833 = vpop.f32.mrb[0].mxu0
      %v834 = vadd.f32 0.0, %v833
      %v835 = vpop.f32.mrb[0].mxu0
      %v836 = vpop.f32.mrb[0].mxu0
      %v837 = vpop.f32.mrb[0].mxu0
      %838 = vdwg.mxu0
      %v839 = vmul.f32 %v834, 0.35355338
      %v840 = vadd.f32 %v839, %v606
      %v841 = vsel %vm554, %v840, -inf
      %842 = vmax.xlane.f32.xlu0 %v841
      %v843 = vpop.xlane.xlu0 %842
      %v844 = vsub.f32 %v840, %v843
      %v845 = vmul.f32 %v844, 1.442695
      %v846 = vpow.pop %v845
      %v847 = vsel %vm554, %v846, 0.0
      %848 = vadd.xlane.f32.xlu0 %v847
      %v849 = vpop.xlane.xlu0 %848
      %v850 = vrcp.pop %v849
      %v851 = vmul.f32 %v846, %v850
      %v852 = vpack.c.bf16 %v851, %v851
      %853 = vrot.lane.b32.xlu0 %v550, 48
      %v854 = vpop.permute.xlu0 %853
      %v856 = vsel %vm554, %v852, 0
      %v859 = vsel %vm626, %v854, 0
      %861 = vmatprep.subr.bf16.mxu0 0
      %862 = vmatpush1.bf16.msra.mxu0 %v859
      %863 = vmatprep.subr.bf16.mxu0 0
      %864 = vmatpush1.bf16.msra.mxu0 0
      %865 = vmatprep.subr.bf16.mxu0 0
      %866 = vmatpush1.bf16.msra.mxu0 0
      %867 = vmatprep.subr.bf16.mxu0 0
      %868 = vmatpush1.bf16.msra.mxu0 0
      %869 = vmatprep.subr.bf16.mxu0 0
      %870 = vmatpush1.bf16.msra.mxu0 0
      %871 = vmatprep.subr.bf16.mxu0 0
      %872 = vmatpush1.bf16.msra.mxu0 0
      %873 = vmatprep.subr.bf16.mxu0 0
      %874 = vmatpush1.bf16.msra.mxu0 0
      %875 = vmatprep.subr.bf16.mxu0 0
      %876 = vmatpush1.bf16.msra.mxu0 0
      %877 = vmatprep.subr.bf16.mxu0 0
      %878 = vmatpush1.bf16.msra.mxu0 0
      %879 = vmatprep.subr.bf16.mxu0 0
      %880 = vmatpush1.bf16.msra.mxu0 0
      %881 = vmatprep.subr.bf16.mxu0 0
      %882 = vmatpush1.bf16.msra.mxu0 0
      %883 = vmatprep.subr.bf16.mxu0 0
      %884 = vmatpush1.bf16.msra.mxu0 0
      %885 = vmatprep.subr.bf16.mxu0 0
      %886 = vmatpush1.bf16.msra.mxu0 0
      %887 = vmatprep.subr.bf16.mxu0 0
      %888 = vmatpush1.bf16.msra.mxu0 0
      %889 = vmatprep.subr.bf16.mxu0 0
      %890 = vmatpush1.bf16.msra.mxu0 0
      %891 = vmatprep.subr.bf16.mxu0 0
      %892 = vmatpush1.bf16.msra.mxu0 0
      %893 = vmatprep.mubr.bf16.mxu0 0
      %894 = vmatmul.mubr.bf16.gmra.mrb[0].mxu0 %v856
      %v895 = vpop.f32.mrb[0].mxu0
      %v896 = vadd.f32 0.0, %v895
      %v897 = vpop.f32.mrb[0].mxu0
      %v898 = vpop.f32.mrb[0].mxu0
      %v899 = vpop.f32.mrb[0].mxu0
      %900 = vdwg.mxu0
      %902 = vrot.lane.b32.xlu0 %v896, 16
      %v903 = vpop.permute.xlu0 %902
      %vm905 = vcmask 195712
      %906 = vst.msk [vmem:[#allocation2] sm:$0xff] %vm905, %v903
      %907 = vrot.lane.b32.xlu0 %v550, 104
      %v908 = vpop.permute.xlu0 %907
      %909 = vrot.lane.b32.xlu0 %v550, 72
      %v910 = vpop.permute.xlu0 %909
      %v912 = vsel %vm554, %v908, 0
      %v915 = vsel %vm554, %v910, 0
      %917 = vmatprep.subr.bf16.mxu0 0
      %918 = vmatpush1.bf16.xpose.msra.mxu0 %v915
      %919 = vmatprep.subr.bf16.mxu0 0
      %920 = vmatpush1.bf16.xpose.msra.mxu0 0
      %921 = vmatprep.subr.bf16.mxu0 0
      %922 = vmatpush1.bf16.xpose.msra.mxu0 0
      %923 = vmatprep.subr.bf16.mxu0 0
      %924 = vmatpush1.bf16.xpose.msra.mxu0 0
      %925 = vmatprep.subr.bf16.mxu0 0
      %926 = vmatpush1.bf16.xpose.msra.mxu0 0
      %927 = vmatprep.subr.bf16.mxu0 0
      %928 = vmatpush1.bf16.xpose.msra.mxu0 0
      %929 = vmatprep.subr.bf16.mxu0 0
      %930 = vmatpush1.bf16.xpose.msra.mxu0 0
      %931 = vmatprep.subr.bf16.mxu0 0
      %932 = vmatpush1.bf16.xpose.msra.mxu0 0
      %933 = vmatprep.subr.bf16.mxu0 0
      %934 = vmatpush1.bf16.xpose.msra.mxu0 0
      %935 = vmatprep.subr.bf16.mxu0 0
      %936 = vmatpush1.bf16.xpose.msra.mxu0 0
      %937 = vmatprep.subr.bf16.mxu0 0
      %938 = vmatpush1.bf16.xpose.msra.mxu0 0
      %939 = vmatprep.subr.bf16.mxu0 0
      %940 = vmatpush1.bf16.xpose.msra.mxu0 0
      %941 = vmatprep.subr.bf16.mxu0 0
      %942 = vmatpush1.bf16.xpose.msra.mxu0 0
      %943 = vmatprep.subr.bf16.mxu0 0
      %944 = vmatpush1.bf16.xpose.msra.mxu0 0
      %945 = vmatprep.subr.bf16.mxu0 0
      %946 = vmatpush1.bf16.xpose.msra.mxu0 0
      %947 = vmatprep.subr.bf16.mxu0 0
      %948 = vmatpush1.bf16.xpose.msra.mxu0 0
      %949 = vmatprep.mubr.bf16.mxu0 0
      %950 = vmatmul.mubr.bf16.gmra.mrb[0].mxu0 %v912
      %v951 = vpop.f32.mrb[0].mxu0
      %v952 = vadd.f32 0.0, %v951
      %v953 = vpop.f32.mrb[0].mxu0
      %v954 = vpop.f32.mrb[0].mxu0
      %v955 = vpop.f32.mrb[0].mxu0
      %956 = vdwg.mxu0
      %v957 = vmul.f32 %v952, 0.35355338
      %v958 = vadd.f32 %v957, %v606
      %v959 = vsel %vm554, %v958, -inf
      %960 = vmax.xlane.f32.xlu0 %v959
      %v961 = vpop.xlane.xlu0 %960
      %v962 = vsub.f32 %v958, %v961
      %v963 = vmul.f32 %v962, 1.442695
      %v964 = vpow.pop %v963
      %v965 = vsel %vm554, %v964, 0.0
      %966 = vadd.xlane.f32.xlu0 %v965
      %v967 = vpop.xlane.xlu0 %966
      %v968 = vrcp.pop %v967
      %v969 = vmul.f32 %v964, %v968
      %v970 = vpack.c.bf16 %v969, %v969
      %971 = vrot.lane.b32.xlu0 %v550, 40
      %v972 = vpop.permute.xlu0 %971
      %v974 = vsel %vm554, %v970, 0
      %v977 = vsel %vm626, %v972, 0
      %979 = vmatprep.subr.bf16.mxu0 0
      %980 = vmatpush1.bf16.msra.mxu0 %v977
      %981 = vmatprep.subr.bf16.mxu0 0
      %982 = vmatpush1.bf16.msra.mxu0 0
      %983 = vmatprep.subr.bf16.mxu0 0
      %984 = vmatpush1.bf16.msra.mxu0 0
      %985 = vmatprep.subr.bf16.mxu0 0
      %986 = vmatpush1.bf16.msra.mxu0 0
      %987 = vmatprep.subr.bf16.mxu0 0
      %988 = vmatpush1.bf16.msra.mxu0 0
      %989 = vmatprep.subr.bf16.mxu0 0
      %990 = vmatpush1.bf16.msra.mxu0 0
      %991 = vmatprep.subr.bf16.mxu0 0
      %992 = vmatpush1.bf16.msra.mxu0 0
      %993 = vmatprep.subr.bf16.mxu0 0
      %994 = vmatpush1.bf16.msra.mxu0 0
      %995 = vmatprep.subr.bf16.mxu0 0
      %996 = vmatpush1.bf16.msra.mxu0 0
      %997 = vmatprep.subr.bf16.mxu0 0
      %998 = vmatpush1.bf16.msra.mxu0 0
      %999 = vmatprep.subr.bf16.mxu0 0
      %1000 = vmatpush1.bf16.msra.mxu0 0
      %1001 = vmatprep.subr.bf16.mxu0 0
      %1002 = vmatpush1.bf16.msra.mxu0 0
      %1003 = vmatprep.subr.bf16.mxu0 0
      %1004 = vmatpush1.bf16.msra.mxu0 0
      %1005 = vmatprep.subr.bf16.mxu0 0
      %1006 = vmatpush1.bf16.msra.mxu0 0
      %1007 = vmatprep.subr.bf16.mxu0 0
      %1008 = vmatpush1.bf16.msra.mxu0 0
      %1009 = vmatprep.subr.bf16.mxu0 0
      %1010 = vmatpush1.bf16.msra.mxu0 0
      %1011 = vmatprep.mubr.bf16.mxu0 0
      %1012 = vmatmul.mubr.bf16.gmra.mrb[0].mxu0 %v974
      %v1013 = vpop.f32.mrb[0].mxu0
      %v1014 = vadd.f32 0.0, %v1013
      %v1015 = vpop.f32.mrb[0].mxu0
      %v1016 = vpop.f32.mrb[0].mxu0
      %v1017 = vpop.f32.mrb[0].mxu0
      %1018 = vdwg.mxu0
      %1020 = vrot.lane.b32.xlu0 %v1014, 24
      %v1021 = vpop.permute.xlu0 %1020
      %vm1023 = vcmask 261312
      %1024 = vst.msk [vmem:[#allocation2] sm:$0xff] %vm1023, %v1021
      %v1025 = vld [vmem:[#allocation2] sm:$0xff]
      %v1026 = vpack.c.bf16 %v1025, %v1025
      %v1027 = vld [vmem:[%s4] sm:$0xf]
      %v1028 = vld [vmem:[%s4 + $0x4] sm:$0xf]
      %v1029 = vld [vmem:[%s4 + $0x8] sm:$0xf]
      %v1030 = vld [vmem:[%s4 + $0xc] sm:$0xf]
      %v1031 = vld [vmem:[%s5] sm:$0x1]
      %v1033 = vlaneseq
      %v1034 = vshrl.u32 %v1033, 7
      %v1035 = vsub.s32 0, %v1034
      %v1036 = vrot.slane %v1031, %v1035
      %v1042 = vunpack.c.l.b16 %v1027
      %v1043 = vunpack.c.l.b16 %v1028
      %v1044 = vunpack.c.l.b16 %v1029
      %v1045 = vunpack.c.l.b16 %v1030
      %v1046 = vpack.c.b16 %v1043, %v1042
      %v1047 = vpack.c.b16 %v1045, %v1044
      %v1051 = vsel %vm503, %v1026, 0
      %1053 = vmatprep.subr.bf16.mxu0 0
      %1054 = vmatpush1.bf16.msra.mxu0 %v1046
      %1055 = vmatprep.subr.bf16.mxu0 0
      %1056 = vmatpush1.bf16.msra.mxu0 %v1047
      %1057 = vmatprep.subr.bf16.mxu0 0
      %1058 = vmatpush1.bf16.msra.mxu0 0
      %1059 = vmatprep.subr.bf16.mxu0 0
      %1060 = vmatpush1.bf16.msra.mxu0 0
      %1061 = vmatprep.subr.bf16.mxu0 0
      %1062 = vmatpush1.bf16.msra.mxu0 0
      %1063 = vmatprep.subr.bf16.mxu0 0
      %1064 = vmatpush1.bf16.msra.mxu0 0
      %1065 = vmatprep.subr.bf16.mxu0 0
      %1066 = vmatpush1.bf16.msra.mxu0 0
      %1067 = vmatprep.subr.bf16.mxu0 0
      %1068 = vmatpush1.bf16.msra.mxu0 0
      %1069 = vmatprep.subr.bf16.mxu0 0
      %1070 = vmatpush1.bf16.msra.mxu0 0
      %1071 = vmatprep.subr.bf16.mxu0 0
      %1072 = vmatpush1.bf16.msra.mxu0 0
      %1073 = vmatprep.subr.bf16.mxu0 0
      %1074 = vmatpush1.bf16.msra.mxu0 0
      %1075 = vmatprep.subr.bf16.mxu0 0
      %1076 = vmatpush1.bf16.msra.mxu0 0
      %1077 = vmatprep.subr.bf16.mxu0 0
      %1078 = vmatpush1.bf16.msra.mxu0 0
      %1079 = vmatprep.subr.bf16.mxu0 0
      %1080 = vmatpush1.bf16.msra.mxu0 0
      %1081 = vmatprep.subr.bf16.mxu0 0
      %1082 = vmatpush1.bf16.msra.mxu0 0
      %1083 = vmatprep.subr.bf16.mxu0 0
      %1084 = vmatpush1.bf16.msra.mxu0 0
      %1085 = vmatprep.mubr.bf16.mxu0 0
      %1086 = vmatmul.mubr.bf16.gmra.mrb[0].mxu0 %v1051
      %v1087 = vpop.f32.mrb[0].mxu0
      %v1088 = vadd.f32 %v1036, %v1087
      %v1089 = vpop.f32.mrb[0].mxu0
      %v1090 = vpop.f32.mrb[0].mxu0
      %v1091 = vpop.f32.mrb[0].mxu0
      %1092 = vdwg.mxu0
      %v1093 = vadd.f32 %v1088, %v478
      %v1094 = vld [vmem:[%s6] sm:$0x1]
      %v1095 = vld [vmem:[%s7] sm:$0x1]
      %v1096 = vsel %vm503, %v1093, 0.0
      %1097 = vadd.xlane.f32.xlu0 %v1096
      %v1098 = vpop.xlane.xlu0 %1097
      %v1099 = vrcp.pop 32.0
      %v1100 = vmul.f32 %v1098, %v1099
      %v1101 = vsub.f32 %v1093, %v1100
      %v1102 = vmul.f32 %v1101, %v1101
      %v1103 = vsel %vm503, %v1102, 0.0
      %1104 = vadd.xlane.f32.xlu0 %v1103
      %v1105 = vpop.xlane.xlu0 %1104
      %v1106 = vmul.f32 %v1105, %v1099
      %v1107 = vadd.f32 %v1106, 1e-12
      %v1108 = vrsqrt.pop %v1107
      %v1109 = vmul.f32 %v1101, %v1108
      %v1111 = vlaneseq
      %v1112 = vshrl.u32 %v1111, 7
      %v1113 = vsub.s32 0, %v1112
      %v1114 = vrot.slane %v1094, %v1113
      %v1116 = vmul.f32 %v1109, %v1114
      %v1118 = vlaneseq
      %v1119 = vshrl.u32 %v1118, 7
      %v1120 = vsub.s32 0, %v1119
      %v1121 = vrot.slane %v1095, %v1120
      %v1123 = vadd.f32 %v1116, %v1121
      %v1124 = vpack.c.bf16 %v1123, %v1123
      %v1125 = vld [vmem:[%s8] sm:$0xf]
      %v1126 = vld [vmem:[%s8 + $0x4] sm:$0xf]
      %v1127 = vld [vmem:[%s8 + $0x8] sm:$0xf]
      %v1128 = vld [vmem:[%s8 + $0xc] sm:$0xf]
      %v1129 = vld [vmem:[%s9] sm:$0x1]
      %v1131 = vlaneseq
      %v1132 = vshrl.u32 %v1131, 7
      %v1133 = vsub.s32 0, %v1132
      %v1134 = vrot.slane %v1129, %v1133
      %v1140 = vunpack.c.l.b16 %v1125
      %v1141 = vunpack.c.l.b16 %v1126
      %v1142 = vunpack.c.l.b16 %v1127
      %v1143 = vunpack.c.l.b16 %v1128
      %v1144 = vpack.c.b16 %v1141, %v1140
      %v1145 = vpack.c.b16 %v1143, %v1142
      %v1149 = vsel %vm503, %v1124, 0
      %1151 = vmatprep.subr.bf16.mxu0 0
      %1152 = vmatpush1.bf16.msra.mxu0 %v1144
      %1153 = vmatprep.subr.bf16.mxu0 0
      %1154 = vmatpush1.bf16.msra.mxu0 %v1145
      %1155 = vmatprep.subr.bf16.mxu0 0
      %1156 = vmatpush1.bf16.msra.mxu0 0
      %1157 = vmatprep.subr.bf16.mxu0 0
      %1158 = vmatpush1.bf16.msra.mxu0 0
      %1159 = vmatprep.subr.bf16.mxu0 0
      %1160 = vmatpush1.bf16.msra.mxu0 0
      %1161 = vmatprep.subr.bf16.mxu0 0
      %1162 = vmatpush1.bf16.msra.mxu0 0
      %1163 = vmatprep.subr.bf16.mxu0 0
      %1164 = vmatpush1.bf16.msra.mxu0 0
      %1165 = vmatprep.subr.bf16.mxu0 0
      %1166 = vmatpush1.bf16.msra.mxu0 0
      %1167 = vmatprep.subr.bf16.mxu0 0
      %1168 = vmatpush1.bf16.msra.mxu0 0
      %1169 = vmatprep.subr.bf16.mxu0 0
      %1170 = vmatpush1.bf16.msra.mxu0 0
      %1171 = vmatprep.subr.bf16.mxu0 0
      %1172 = vmatpush1.bf16.msra.mxu0 0
      %1173 = vmatprep.subr.bf16.mxu0 0
      %1174 = vmatpush1.bf16.msra.mxu0 0
      %1175 = vmatprep.subr.bf16.mxu0 0
      %1176 = vmatpush1.bf16.msra.mxu0 0
      %1177 = vmatprep.subr.bf16.mxu0 0
      %1178 = vmatpush1.bf16.msra.mxu0 0
      %1179 = vmatprep.subr.bf16.mxu0 0
      %1180 = vmatpush1.bf16.msra.mxu0 0
      %1181 = vmatprep.subr.bf16.mxu0 0
      %1182 = vmatpush1.bf16.msra.mxu0 0
      %1183 = vmatprep.mubr.bf16.mxu0 0
      %1184 = vmatmul.mubr.bf16.gmra.mrb[0].mxu0 %v1149
      %v1185 = vpop.f32.mrb[0].mxu0
      %v1186 = vadd.f32 %v1134, %v1185
      %v1187 = vpop.f32.mrb[0].mxu0
      %v1188 = vpop.f32.mrb[0].mxu0
      %v1189 = vpop.f32.mrb[0].mxu0
      %1190 = vdwg.mxu0
      %v1191 = vmul.f32 %v1186, 0.5
      %v1192 = vmul.f32 %v1186, 0.044715
      %v1193 = vmul.f32 %v1192, %v1186
      %v1194 = vmul.f32 %v1193, %v1186
      %v1195 = vadd.f32 %v1186, %v1194
      %v1196 = vmul.f32 %v1195, 0.7978846
      %v1197 = vtanh.pop %v1196
      %v1198 = vadd.f32 %v1197, 1.0
      %v1199 = vmul.f32 %v1191, %v1198
      %v1200 = vpack.c.bf16 %v1199, %v1199
      %v1201 = vld [vmem:[%s10] sm:$0xf]
      %v1202 = vld [vmem:[%s10 + $0x4] sm:$0xf]
      %v1203 = vld [vmem:[%s10 + $0x8] sm:$0xf]
      %v1204 = vld [vmem:[%s10 + $0xc] sm:$0xf]
      %v1205 = vld [vmem:[%s10 + $0x10] sm:$0xf]
      %v1206 = vld [vmem:[%s10 + $0x14] sm:$0xf]
      %v1207 = vld [vmem:[%s10 + $0x18] sm:$0xf]
      %v1208 = vld [vmem:[%s10 + $0x1c] sm:$0xf]
      %v1209 = vld [vmem:[%s11] sm:$0x1]
      %v1211 = vlaneseq
      %v1212 = vshrl.u32 %v1211, 7
      %v1213 = vsub.s32 0, %v1212
      %v1214 = vrot.slane %v1209, %v1213
      %v1224 = vunpack.c.l.b16 %v1201
      %v1225 = vunpack.c.l.b16 %v1202
      %v1226 = vunpack.c.l.b16 %v1203
      %v1227 = vunpack.c.l.b16 %v1204
      %v1228 = vunpack.c.l.b16 %v1205
      %v1229 = vunpack.c.l.b16 %v1206
      %v1230 = vunpack.c.l.b16 %v1207
      %v1231 = vunpack.c.l.b16 %v1208
      %v1232 = vpack.c.b16 %v1225, %v1224
      %v1233 = vpack.c.b16 %v1227, %v1226
      %v1234 = vpack.c.b16 %v1229, %v1228
      %v1235 = vpack.c.b16 %v1231, %v1230
      %vm1240 = vcmask 523264
      %v1242 = vsel %vm1240, %v1200, 0
      %1244 = vmatprep.subr.bf16.mxu0 0
      %1245 = vmatpush1.bf16.msra.mxu0 %v1232
      %1246 = vmatprep.subr.bf16.mxu0 0
      %1247 = vmatpush1.bf16.msra.mxu0 %v1233
      %1248 = vmatprep.subr.bf16.mxu0 0
      %1249 = vmatpush1.bf16.msra.mxu0 %v1234
      %1250 = vmatprep.subr.bf16.mxu0 0
      %1251 = vmatpush1.bf16.msra.mxu0 %v1235
      %1252 = vmatprep.subr.bf16.mxu0 0
      %1253 = vmatpush1.bf16.msra.mxu0 0
      %1254 = vmatprep.subr.bf16.mxu0 0
      %1255 = vmatpush1.bf16.msra.mxu0 0
      %1256 = vmatprep.subr.bf16.mxu0 0
      %1257 = vmatpush1.bf16.msra.mxu0 0
      %1258 = vmatprep.subr.bf16.mxu0 0
      %1259 = vmatpush1.bf16.msra.mxu0 0
      %1260 = vmatprep.subr.bf16.mxu0 0
      %1261 = vmatpush1.bf16.msra.mxu0 0
      %1262 = vmatprep.subr.bf16.mxu0 0
      %1263 = vmatpush1.bf16.msra.mxu0 0
      %1264 = vmatprep.subr.bf16.mxu0 0
      %1265 = vmatpush1.bf16.msra.mxu0 0
      %1266 = vmatprep.subr.bf16.mxu0 0
      %1267 = vmatpush1.bf16.msra.mxu0 0
      %1268 = vmatprep.subr.bf16.mxu0 0
      %1269 = vmatpush1.bf16.msra.mxu0 0
      %1270 = vmatprep.subr.bf16.mxu0 0
      %1271 = vmatpush1.bf16.msra.mxu0 0
      %1272 = vmatprep.subr.bf16.mxu0 0
      %1273 = vmatpush1.bf16.msra.mxu0 0
      %1274 = vmatprep.subr.bf16.mxu0 0
      %1275 = vmatpush1.bf16.msra.mxu0 0
      %1276 = vmatprep.mubr.bf16.mxu0 0
      %1277 = vmatmul.mubr.bf16.gmra.mrb[0].mxu0 %v1242
      %v1278 = vpop.f32.mrb[0].mxu0
      %v1279 = vadd.f32 %v1214, %v1278
      %v1280 = vpop.f32.mrb[0].mxu0
      %v1281 = vpop.f32.mrb[0].mxu0
      %v1282 = vpop.f32.mrb[0].mxu0
      %1283 = vdwg.mxu0
      %v1284 = vadd.f32 %v1279, %v1123
      %v1285 = vld [vmem:[%s12] sm:$0x1]
      %v1286 = vld [vmem:[%s13] sm:$0x1]
      %v1287 = vsel %vm503, %v1284, 0.0
      %1288 = vadd.xlane.f32.xlu0 %v1287
      %v1289 = vpop.xlane.xlu0 %1288
      %v1290 = vmul.f32 %v1289, %v1099
      %v1291 = vsub.f32 %v1284, %v1290
      %v1292 = vmul.f32 %v1291, %v1291
      %v1293 = vsel %vm503, %v1292, 0.0
      %1294 = vadd.xlane.f32.xlu0 %v1293
      %v1295 = vpop.xlane.xlu0 %1294
      %v1296 = vmul.f32 %v1295, %v1099
      %v1297 = vadd.f32 %v1296, 1e-12
      %v1298 = vrsqrt.pop %v1297
      %v1299 = vmul.f32 %v1291, %v1298
      %v1301 = vlaneseq
      %v1302 = vshrl.u32 %v1301, 7
      %v1303 = vsub.s32 0, %v1302
      %v1304 = vrot.slane %v1285, %v1303
      %v1306 = vmul.f32 %v1299, %v1304
      %v1308 = vlaneseq
      %v1309 = vshrl.u32 %v1308, 7
      %v1310 = vsub.s32 0, %v1309
      %v1311 = vrot.slane %v1286, %v1310
      %v1313 = vadd.f32 %v1306, %v1311
      %1314 = vst.msk [vmem:[%s476] sm:$0xff] %vm503, %v1313
      %p1315 = scmp.lt.s32.totalorder %s25, 1
      %s1316 = scalar_select %p1315, %s25, 1
      %s1317 = smul.addr %s1316, 8
      %s1318 = scalar_lea.vmem %s14, %s1317
      // Predicated region
      $region77: #{bert_forward.5} parent=75 // pred_check
        %p1319 = pneg %p347
      $region78: #{bert_forward.5} parent=75 // pred_check_branch
        %1321 = sbr.rel (%p1319) target = $region80
      $region79: #{bert_forward.5} parent=75 // pred_region
        _
      $region80: #{bert_forward.5} parent=75 // pred_fallthru
        _
    $region76: #{bert_forward.5} parent=5 // pred_fallthru
      _
    %p1322 = scmp.le.s32.totalorder 2, %s20
    // Predicated region
    $region81: #{bert_forward.5} parent=5 // pred_check
      %p1323 = pneg %p1322
    $region82: #{bert_forward.5} parent=5 // pred_check_branch
      %1325 = sbr.rel (%p1323) target = $region84
    $region83: #{bert_forward.5} parent=5 // pred_region
      %s1326 = ssub.s32 %s20, 2
      // Predicated region
      $region85: #{bert_forward.5} parent=83 // pred_check
        %p1327 = pneg %p353
      $region86: #{bert_forward.5} parent=83 // pred_check_branch
        %1329 = sbr.rel (%p1327) target = $region88
      $region87: #{bert_forward.5} parent=83 // pred_region
        %p1330 = scmp.lt.s32.totalorder %s26, 1
        %s1331 = scalar_select %p1330, %s26, 1
        %s1332 = smul.addr %s1331, 8
        %s1333 = scalar_lea.vmem %s14, %s1332
      $region88: #{bert_forward.5} parent=83 // pred_fallthru
        _
    $region84: #{bert_forward.5} parent=5 // pred_fallthru
      _
  $region6: #{bert_forward.5} parent=0 // loop_footer
    %s24 = sadd.s32 1, %s20
  $region7: #{bert_forward.5} parent=0 // loop_footer_branch
    %19 = sbr.rel target = $region3
  $region8: #{bert_forward.5} parent=0 // loop_exit
    _

</llo_original>
